<compile_context>
chip_gen: v7x
topology: tpu7x:2x2x1
jax: 0.10.0
libtpu: 0.0.40
codegen_flags: <defaults>
</compile_context>

<pallas_src>
import functools

import jax
import jax.numpy as jnp
from jax.experimental import pallas as pl
from jax.experimental.pallas import tpu as pltpu


# ---------------------------------------------------------------------------
# Kernel: one transformer layer for one batch element; grid=(batch, depth),
# residual stream carried in VMEM scratch across the depth axis.
# ---------------------------------------------------------------------------
def _transformer_kernel(x_ref,
                        ln1_g_ref, ln1_b_ref,
                        wqkv_ref, wo_ref, bo_ref,
                        ln2_g_ref, ln2_b_ref,
                        w1_ref, b1_ref, w2_ref, b2_ref,
                        attn_out_ref, hid_out_ref,
                        x_sc, qkv_sc, o_sc,
                        *, heads, dim_head, eps):
    n, dim = x_ref.shape
    inner = heads * dim_head
    f32 = jnp.float32
    mxu = wqkv_ref.dtype            # bf16 fast path on v5e/v6e/v7x, f32 for exact check
    l = pl.program_id(1)            # layer index (inner, "arbitrary" grid axis)

    # Layer 0: load the residual stream into the VMEM carry; later layers reuse it.
    @pl.when(l == 0)
    def _():
        x_sc[...] = x_ref[...].astype(f32)

    x = x_sc[...]                                               # (n, dim) f32

    def layer_norm(z, g, b):
        mu = jnp.mean(z, axis=-1, keepdims=True)
        c = z - mu
        var = jnp.mean(c * c, axis=-1, keepdims=True)
        return c * jax.lax.rsqrt(var + eps) * g + b

    # ----------------- PreNorm + Attention + residual -----------------
    xn = layer_norm(x, ln1_g_ref[...], ln1_b_ref[...])          # (n, dim) f32

    # One wide QKV matmul (192-lane MXU output); softmax scale pre-folded into Wq.
    qkv = jnp.dot(xn.astype(mxu), wqkv_ref[...],
                  preferred_element_type=f32).astype(mxu)       # (n, 3*inner)

    # Split heads through a tiny VMEM staging buffer (lane slices + stores; no
    # value reshapes).  Column order is (q|k|v, head, dh) from the prep step.
    for idx in range(3 * heads):
        qkv_sc[idx] = qkv[:, idx * dim_head:(idx + 1) * dim_head]
    q = qkv_sc[0:heads]                                         # (h, n, dh)
    k = qkv_sc[heads:2 * heads]                                 # (h, n, dh)
    v = qkv_sc[2 * heads:3 * heads]                             # (h, n, dh)

    s = jnp.einsum('hnd,hmd->hnm', q, k, preferred_element_type=f32)   # (h, n, n) f32
    m = jnp.max(s, axis=-1, keepdims=True)
    e = jnp.exp(s - m)
    p = e * pl.reciprocal(jnp.sum(e, axis=-1, keepdims=True), approx=True)

    o = jnp.einsum('hnm,hmd->hnd', p.astype(mxu), v,
                   preferred_element_type=f32)                  # (h, n, dh) f32

    # Merge heads back to a lane-dense (n, inner) buffer so the output projection
    # is a single K=inner matmul (no per-head K=16 matmuls, no head-sum).
    for h in range(heads):
        o_sc[:, h * dim_head:(h + 1) * dim_head] = o[h].astype(mxu)

    y_attn = jnp.dot(o_sc[...], wo_ref[...],
                     preferred_element_type=f32) + bo_ref[...]  # (n, dim) f32
    x_attn = y_attn + x
    attn_out_ref[...] = x_attn.astype(attn_out_ref.dtype)

    # ----------------- PreNorm + FeedForward + residual -----------------
    xn2 = layer_norm(x_attn, ln2_g_ref[...], ln2_b_ref[...])
    hmid = jnp.dot(xn2.astype(mxu), w1_ref[...],
                   preferred_element_type=f32) + b1_ref[...]
    # TODO(synk): PyTorch nn.GELU() default is the exact erf GELU; tanh approx used here.
    hmid = jax.nn.gelu(hmid, approximate=True)
    y2 = jnp.dot(hmid.astype(mxu), w2_ref[...],
                 preferred_element_type=f32) + b2_ref[...]
    x_out = y2 + x_attn
    hid_out_ref[...] = x_out.astype(hid_out_ref.dtype)
    x_sc[...] = x_out                                           # carry residual to next layer


# ---------------------------------------------------------------------------
# Wrapper: one pallas_call for the whole depth stack.
# ---------------------------------------------------------------------------
def transformer_forward_pallas(x, params, *, heads, dim_head, eps=1e-5):
    """Mirrors Transformer.forward: returns (x, hidden_states, attentions)."""
    b, n, dim = x.shape
    inner = heads * dim_head
    depth = params['w_qkv'].shape[0]
    mlp_dim = params['w1'].shape[-1]
    mxu_dtype = params['w_qkv'].dtype

    kernel = functools.partial(_transformer_kernel, heads=heads,
                               dim_head=dim_head, eps=eps)

    def wspec(shape):  # per-layer weight block, indexed by the depth axis
        return pl.BlockSpec((None,) + shape, lambda i, l, _s=shape: (l,) + (0,) * len(_s))

    grid_spec = pltpu.PrefetchScalarGridSpec(
        num_scalar_prefetch=0,
        grid=(b, depth),                      # batch outer ("parallel"), depth inner
        in_specs=[
            pl.BlockSpec((None, n, dim), lambda i, l: (i, 0, 0)),     # x (read at l==0)
            wspec((1, dim)), wspec((1, dim)),                         # ln1 gamma/beta
            wspec((dim, 3 * inner)),                                  # w_qkv (scale folded)
            wspec((inner, dim)), wspec((1, dim)),                     # w_o, b_o
            wspec((1, dim)), wspec((1, dim)),                         # ln2 gamma/beta
            wspec((dim, mlp_dim)), wspec((1, mlp_dim)),               # w1, b1
            wspec((mlp_dim, dim)), wspec((1, dim)),                   # w2, b2
        ],
        out_specs=[
            pl.BlockSpec((None, None, n, dim), lambda i, l: (l, i, 0, 0)),  # attn+res
            pl.BlockSpec((None, None, n, dim), lambda i, l: (l, i, 0, 0)),  # ff+res
        ],
        scratch_shapes=[
            pltpu.VMEM((n, dim), jnp.float32),                  # residual carry
            pltpu.VMEM((3 * heads, n, dim_head), mxu_dtype),    # q|k|v head staging
            pltpu.VMEM((n, inner), mxu_dtype),                  # merged attention context
        ],
    )

    attn_stack, hid_stack = pl.pallas_call(
        kernel,
        out_shape=(jax.ShapeDtypeStruct((depth, b, n, dim), x.dtype),
                   jax.ShapeDtypeStruct((depth, b, n, dim), x.dtype)),
        grid_spec=grid_spec,
        compiler_params=pltpu.CompilerParams(
            dimension_semantics=("parallel", "arbitrary")),     # v7x: 2 TCs split batch
    )(x, params['ln1_g'], params['ln1_b'], params['w_qkv'],
      params['w_o'], params['b_o'], params['ln2_g'], params['ln2_b'],
      params['w1'], params['b1'], params['w2'], params['b2'])

    hidden_states = [hid_stack[l] for l in range(depth)]
    attentions = [attn_stack[l] for l in range(depth)]
    return hidden_states[-1], hidden_states, attentions


# ---------------------------------------------------------------------------
# One-time parameter prep (hoisted out of the call path).
# PyTorch nn.Linear layout is (out_features, in_features).
# ---------------------------------------------------------------------------
def prep_params(torch_layers, heads, dim_head, mxu_dtype):
    f32 = jnp.float32
    inner = heads * dim_head
    scale = dim_head ** (-0.5)
    prepped = []
    for p in torch_layers:
        dim = p['w_out'].shape[0]
        w_qkv = jnp.asarray(p['w_qkv']).T                    # (dim, 3*inner); cols = (q|k|v, head, dh)
        w_qkv = w_qkv.at[:, :inner].multiply(scale)          # fold softmax scale into Wq
        prepped.append(dict(
            ln1_g=p['ln1_g'].reshape(1, dim).astype(f32),
            ln1_b=p['ln1_b'].reshape(1, dim).astype(f32),
            w_qkv=w_qkv.astype(mxu_dtype),
            w_o=p['w_out'].T.astype(mxu_dtype),              # (inner, dim)
            b_o=p['b_out'].reshape(1, dim).astype(f32),
            ln2_g=p['ln2_g'].reshape(1, dim).astype(f32),
            ln2_b=p['ln2_b'].reshape(1, dim).astype(f32),
            w1=p['w1'].T.astype(mxu_dtype),                  # (dim, mlp_dim)
            b1=p['b1'].reshape(1, -1).astype(f32),
            w2=p['w2'].T.astype(mxu_dtype),                  # (mlp_dim, dim)
            b2=p['b2'].reshape(1, dim).astype(f32),
        ))
    # Stack all layers along a leading depth axis for the fused single-launch kernel.
    return {k: jnp.stack([lp[k] for lp in prepped]) for k in prepped[0]}


# ---------------------------------------------------------------------------
# Pure-JAX reference mirroring the PyTorch module (f32).
# ---------------------------------------------------------------------------
def transformer_reference(x, layers, *, heads, dim_head, eps=1e-5):
    def ln(z, g, b):
        mu = jnp.mean(z, -1, keepdims=True)
        var = jnp.mean((z - mu) ** 2, -1, keepdims=True)
        return (z - mu) / jnp.sqrt(var + eps) * g + b

    b_, n, dim = x.shape
    inner = heads * dim_head
    scale = dim_head ** (-0.5)
    hidden_states, attentions = [], []
    for p in layers:
        xn = ln(x, p['ln1_g'], p['ln1_b'])
        qkv = jnp.einsum('bnd,od->bno', xn, p['w_qkv'])
        q, k, v = jnp.split(qkv, 3, axis=-1)
        to_h = lambda t: t.reshape(b_, n, heads, dim_head).transpose(0, 2, 1, 3)
        q, k, v = map(to_h, (q, k, v))
        dots = jnp.einsum('bhid,bhjd->bhij', q, k) * scale
        attn = jax.nn.softmax(dots, axis=-1)
        o = jnp.einsum('bhij,bhjd->bhid', attn, v)
        o = o.transpose(0, 2, 1, 3).reshape(b_, n, inner)
        y = jnp.einsum('bni,oi->bno', o, p['w_out']) + p['b_out']
        x = y + x
        attentions.append(x)
        xn2 = ln(x, p['ln2_g'], p['ln2_b'])
        h = jax.nn.gelu(jnp.einsum('bnd,md->bnm', xn2, p['w1']) + p['b1'],
                        approximate=True)
        y2 = jnp.einsum('bnm,dm->bnd', h, p['w2']) + p['b2']
        x = y2 + x
        hidden_states.append(x)
    return x, hidden_states, attentions


def init_params(key, dim, depth, heads, dim_head, mlp_dim):
    inner = heads * dim_head
    layers = []
    for _ in range(depth):
        key, *ks = jax.random.split(key, 10)
        layers.append(dict(
            ln1_g=1.0 + 0.1 * jax.random.normal(ks[0], (dim,), jnp.float32),
            ln1_b=0.02 * jax.random.normal(ks[1], (dim,), jnp.float32),
            w_qkv=jax.random.normal(ks[2], (3 * inner, dim), jnp.float32) * dim ** -0.5,
            w_out=jax.random.normal(ks[3], (dim, inner), jnp.float32) * inner ** -0.5,
            b_out=0.02 * jax.random.normal(ks[4], (dim,), jnp.float32),
            ln2_g=1.0 + 0.1 * jax.random.normal(ks[5], (dim,), jnp.float32),
            ln2_b=0.02 * jax.random.normal(ks[6], (dim,), jnp.float32),
            w1=jax.random.normal(ks[7], (mlp_dim, dim), jnp.float32) * dim ** -0.5,
            b1=0.02 * jax.random.normal(ks[8], (mlp_dim,), jnp.float32),
            w2=jax.random.normal(key, (dim, mlp_dim), jnp.float32) * mlp_dim ** -0.5,
            b2=jnp.zeros((dim,), jnp.float32),
        ))
    return layers


if __name__ == "__main__":
    batch, seq, dim = 2, 8, 32
    heads, dim_head, mlp_dim, depth = 4, 16, 64, 2

    key = jax.random.PRNGKey(0)
    key, kx = jax.random.split(key)
    x = jax.random.normal(kx, (batch, seq, dim), jnp.float32)
    torch_params = init_params(key, dim, depth, heads, dim_head, mlp_dim)

    y_ref, hidden_ref, attn_ref = transformer_reference(
        x, torch_params, heads=heads, dim_head=dim_head)

    fwd = jax.jit(functools.partial(
        transformer_forward_pallas, heads=heads, dim_head=dim_head))

    # --- f32 MXU operands: strict correctness check -----------------------
    params_f32 = prep_params(torch_params, heads, dim_head, jnp.float32)
    y, hidden, attns = jax.block_until_ready(fwd(x, params_f32))
    assert y.shape == (batch, seq, dim)
    assert bool(jnp.allclose(y, y_ref, atol=2e-2, rtol=2e-2)), "final x mismatch (f32)"
    for a, b in zip(hidden, hidden_ref):
        assert bool(jnp.allclose(a, b, atol=2e-2, rtol=2e-2)), "hidden_states mismatch (f32)"
    for a, b in zip(attns, attn_ref):
        assert bool(jnp.allclose(a, b, atol=2e-2, rtol=2e-2)), "attentions mismatch (f32)"

    # --- bf16 MXU operands (fast path on v5e/v6e/v7x): loose sanity check --
    params_bf16 = prep_params(torch_params, heads, dim_head, jnp.bfloat16)
    y16, hidden16, attns16 = jax.block_until_ready(fwd(x, params_bf16))
    assert bool(jnp.all(jnp.isfinite(y16)))
    assert bool(jnp.allclose(y16, y_ref, atol=2e-1, rtol=1e-1)), "final x mismatch (bf16)"

    print("KERNEL_OK")
</pallas_src>

<mosaic_0001>
module attributes {stable_mosaic.version = 11 : i64} {
  func.func @_transformer_kernel(%arg0: i32, %arg1: i32, %arg2: memref<1x8x32xf32, #tpu.memory_space<vmem>>, %arg3: memref<1x1x32xf32, #tpu.memory_space<vmem>>, %arg4: memref<1x1x32xf32, #tpu.memory_space<vmem>>, %arg5: memref<1x32x192xf32, #tpu.memory_space<vmem>>, %arg6: memref<1x64x32xf32, #tpu.memory_space<vmem>>, %arg7: memref<1x1x32xf32, #tpu.memory_space<vmem>>, %arg8: memref<1x1x32xf32, #tpu.memory_space<vmem>>, %arg9: memref<1x1x32xf32, #tpu.memory_space<vmem>>, %arg10: memref<1x32x64xf32, #tpu.memory_space<vmem>>, %arg11: memref<1x1x64xf32, #tpu.memory_space<vmem>>, %arg12: memref<1x64x32xf32, #tpu.memory_space<vmem>>, %arg13: memref<1x1x32xf32, #tpu.memory_space<vmem>>, %arg14: memref<1x1x8x32xf32, #tpu.memory_space<vmem>>, %arg15: memref<1x1x8x32xf32, #tpu.memory_space<vmem>>, %arg16: memref<8x32xf32, #tpu.memory_space<vmem>>, %arg17: memref<12x8x16xf32, #tpu.memory_space<vmem>>, %arg18: memref<8x64xf32, #tpu.memory_space<vmem>>) attributes {dimension_semantics = [#tpu.dimension_semantics<parallel>, #tpu.dimension_semantics<arbitrary>], iteration_bounds = array<i64: 2, 2>, scalar_prefetch = 0 : i64, scratch_operands = 3 : i64, tpu.core_type = #tpu.core_type<tc>, window_params = [{transform_indices = @transform_0, window_bounds = array<i64: 1, 8, 32>}, {transform_indices = @transform_1, window_bounds = array<i64: 1, 1, 32>}, {transform_indices = @transform_2, window_bounds = array<i64: 1, 1, 32>}, {transform_indices = @transform_3, window_bounds = array<i64: 1, 32, 192>}, {transform_indices = @transform_4, window_bounds = array<i64: 1, 64, 32>}, {transform_indices = @transform_5, window_bounds = array<i64: 1, 1, 32>}, {transform_indices = @transform_6, window_bounds = array<i64: 1, 1, 32>}, {transform_indices = @transform_7, window_bounds = array<i64: 1, 1, 32>}, {transform_indices = @transform_8, window_bounds = array<i64: 1, 32, 64>}, {transform_indices = @transform_9, window_bounds = array<i64: 1, 1, 64>}, {transform_indices = @transform_10, window_bounds = array<i64: 1, 64, 32>}, {transform_indices = @transform_11, window_bounds = array<i64: 1, 1, 32>}, {transform_indices = @transform_12, window_bounds = array<i64: 1, 1, 8, 32>}, {transform_indices = @transform_13, window_bounds = array<i64: 1, 1, 8, 32>}]} {
    %c0_i32 = arith.constant 0 : i32
    %0 = arith.cmpi eq, %arg1, %c0_i32 : i32
    %1 = arith.extui %0 : i1 to i32
    %c0_i32_0 = arith.constant 0 : i32
    %2 = arith.cmpi ne, %1, %c0_i32_0 : i32
    scf.if %2 {
      %c0_107 = arith.constant 0 : index
      %c0_108 = arith.constant 0 : index
      %c0_109 = arith.constant 0 : index
      %174 = vector.load %arg2[%c0_107, %c0_108, %c0_109] : memref<1x8x32xf32, #tpu.memory_space<vmem>>, vector<1x8x32xf32>
      %175 = vector.shape_cast %174 : vector<1x8x32xf32> to vector<8x32xf32>
      %c0_110 = arith.constant 0 : index
      %c0_111 = arith.constant 0 : index
      %176 = vector.load %arg16[%c0_110, %c0_111] : memref<8x32xf32, #tpu.memory_space<vmem>>, vector<8x32xf32>
      tpu.vector_store %arg16[%c0_110, %c0_111], %175 {strides = array<i32>} : memref<8x32xf32, #tpu.memory_space<vmem>>, vector<8x32xf32>,
    } else {
    }
    %c0 = arith.constant 0 : index
    %c0_1 = arith.constant 0 : index
    %3 = vector.load %arg16[%c0, %c0_1] : memref<8x32xf32, #tpu.memory_space<vmem>>, vector<8x32xf32>
    %c0_2 = arith.constant 0 : index
    %c0_3 = arith.constant 0 : index
    %c0_4 = arith.constant 0 : index
    %4 = vector.load %arg3[%c0_2, %c0_3, %c0_4] : memref<1x1x32xf32, #tpu.memory_space<vmem>>, vector<1x1x32xf32>
    %5 = vector.shape_cast %4 : vector<1x1x32xf32> to vector<1x32xf32>
    %c0_5 = arith.constant 0 : index
    %c0_6 = arith.constant 0 : index
    %c0_7 = arith.constant 0 : index
    %6 = vector.load %arg4[%c0_5, %c0_6, %c0_7] : memref<1x1x32xf32, #tpu.memory_space<vmem>>, vector<1x1x32xf32>
    %7 = vector.shape_cast %6 : vector<1x1x32xf32> to vector<1x32xf32>
    %cst = arith.constant dense<0.000000e+00> : vector<8xf32>
    %8 = vector.multi_reduction <add>, %3, %cst [1] : vector<8x32xf32> to vector<8xf32>
    %9 = vector.shape_cast %8 : vector<8xf32> to vector<8x1xf32>
    %cst_8 = arith.constant 3.200000e+01 : f32
    %10 = vector.broadcast %cst_8 : f32 to vector<8x1xf32>
    %11 = arith.divf %9, %10 : vector<8x1xf32>
    %12 = vector.broadcast %11 : vector<8x1xf32> to vector<8x32xf32>
    %13 = arith.subf %3, %12 : vector<8x32xf32>
    %14 = arith.mulf %13, %13 : vector<8x32xf32>
    %cst_9 = arith.constant dense<0.000000e+00> : vector<8xf32>
    %15 = vector.multi_reduction <add>, %14, %cst_9 [1] : vector<8x32xf32> to vector<8xf32>
    %16 = vector.shape_cast %15 : vector<8xf32> to vector<8x1xf32>
    %cst_10 = arith.constant 3.200000e+01 : f32
    %17 = vector.broadcast %cst_10 : f32 to vector<8x1xf32>
    %18 = arith.divf %16, %17 : vector<8x1xf32>
    %cst_11 = arith.constant 9.99999974E-6 : f32
    %19 = vector.broadcast %cst_11 : f32 to vector<8x1xf32>
    %20 = arith.addf %18, %19 : vector<8x1xf32>
    %21 = math.rsqrt %20 : vector<8x1xf32>
    %22 = vector.broadcast %21 : vector<8x1xf32> to vector<8x32xf32>
    %23 = arith.mulf %13, %22 : vector<8x32xf32>
    %24 = vector.broadcast %5 : vector<1x32xf32> to vector<8x32xf32>
    %25 = arith.mulf %23, %24 : vector<8x32xf32>
    %26 = vector.broadcast %7 : vector<1x32xf32> to vector<8x32xf32>
    %27 = arith.addf %25, %26 : vector<8x32xf32>
    %c0_12 = arith.constant 0 : index
    %c0_13 = arith.constant 0 : index
    %c0_14 = arith.constant 0 : index
    %28 = vector.load %arg5[%c0_12, %c0_13, %c0_14] : memref<1x32x192xf32, #tpu.memory_space<vmem>>, vector<1x32x192xf32>
    %29 = vector.shape_cast %28 : vector<1x32x192xf32> to vector<32x192xf32>
    %cst_15 = arith.constant dense<0.000000e+00> : vector<8x192xf32>
    %30 = tpu.matmul %27, %29, %cst_15 {dimension_numbers = #tpu.dot_dimension_numbers<[1], [0], [0], [1], [0, 0, 1, 1], [], []>} : vector<8x32xf32>, vector<32x192xf32>, vector<8x192xf32> -> vector<8x192xf32>
    %31 = vector.extract_strided_slice %30 {offsets = [0, 0], sizes = [8, 16], strides = [1, 1]} : vector<8x192xf32> to vector<8x16xf32>
    %c0_16 = arith.constant 0 : index
    %c0_17 = arith.constant 0 : index
    %c0_18 = arith.constant 0 : index
    %32 = vector.load %arg17[%c0_16, %c0_17, %c0_18] : memref<12x8x16xf32, #tpu.memory_space<vmem>>, vector<1x8x16xf32>
    %33 = vector.shape_cast %32 : vector<1x8x16xf32> to vector<8x16xf32>
    %34 = vector.shape_cast %31 : vector<8x16xf32> to vector<1x8x16xf32>
    tpu.vector_store %arg17[%c0_16, %c0_17, %c0_18], %34 {strides = array<i32>} : memref<12x8x16xf32, #tpu.memory_space<vmem>>, vector<1x8x16xf32>,
    %35 = vector.extract_strided_slice %30 {offsets = [0, 16], sizes = [8, 16], strides = [1, 1]} : vector<8x192xf32> to vector<8x16xf32>
    %c1 = arith.constant 1 : index
    %c0_19 = arith.constant 0 : index
    %c0_20 = arith.constant 0 : index
    %36 = vector.load %arg17[%c1, %c0_19, %c0_20] : memref<12x8x16xf32, #tpu.memory_space<vmem>>, vector<1x8x16xf32>
    %37 = vector.shape_cast %36 : vector<1x8x16xf32> to vector<8x16xf32>
    %38 = vector.shape_cast %35 : vector<8x16xf32> to vector<1x8x16xf32>
    tpu.vector_store %arg17[%c1, %c0_19, %c0_20], %38 {strides = array<i32>} : memref<12x8x16xf32, #tpu.memory_space<vmem>>, vector<1x8x16xf32>,
    %39 = vector.extract_strided_slice %30 {offsets = [0, 32], sizes = [8, 16], strides = [1, 1]} : vector<8x192xf32> to vector<8x16xf32>
    %c2 = arith.constant 2 : index
    %c0_21 = arith.constant 0 : index
    %c0_22 = arith.constant 0 : index
    %40 = vector.load %arg17[%c2, %c0_21, %c0_22] : memref<12x8x16xf32, #tpu.memory_space<vmem>>, vector<1x8x16xf32>
    %41 = vector.shape_cast %40 : vector<1x8x16xf32> to vector<8x16xf32>
    %42 = vector.shape_cast %39 : vector<8x16xf32> to vector<1x8x16xf32>
    tpu.vector_store %arg17[%c2, %c0_21, %c0_22], %42 {strides = array<i32>} : memref<12x8x16xf32, #tpu.memory_space<vmem>>, vector<1x8x16xf32>,
    %43 = vector.extract_strided_slice %30 {offsets = [0, 48], sizes = [8, 16], strides = [1, 1]} : vector<8x192xf32> to vector<8x16xf32>
    %c3 = arith.constant 3 : index
    %c0_23 = arith.constant 0 : index
    %c0_24 = arith.constant 0 : index
    %44 = vector.load %arg17[%c3, %c0_23, %c0_24] : memref<12x8x16xf32, #tpu.memory_space<vmem>>, vector<1x8x16xf32>
    %45 = vector.shape_cast %44 : vector<1x8x16xf32> to vector<8x16xf32>
    %46 = vector.shape_cast %43 : vector<8x16xf32> to vector<1x8x16xf32>
    tpu.vector_store %arg17[%c3, %c0_23, %c0_24], %46 {strides = array<i32>} : memref<12x8x16xf32, #tpu.memory_space<vmem>>, vector<1x8x16xf32>,
    %47 = vector.extract_strided_slice %30 {offsets = [0, 64], sizes = [8, 16], strides = [1, 1]} : vector<8x192xf32> to vector<8x16xf32>
    %c4 = arith.constant 4 : index
    %c0_25 = arith.constant 0 : index
    %c0_26 = arith.constant 0 : index
    %48 = vector.load %arg17[%c4, %c0_25, %c0_26] : memref<12x8x16xf32, #tpu.memory_space<vmem>>, vector<1x8x16xf32>
    %49 = vector.shape_cast %48 : vector<1x8x16xf32> to vector<8x16xf32>
    %50 = vector.shape_cast %47 : vector<8x16xf32> to vector<1x8x16xf32>
    tpu.vector_store %arg17[%c4, %c0_25, %c0_26], %50 {strides = array<i32>} : memref<12x8x16xf32, #tpu.memory_space<vmem>>, vector<1x8x16xf32>,
    %51 = vector.extract_strided_slice %30 {offsets = [0, 80], sizes = [8, 16], strides = [1, 1]} : vector<8x192xf32> to vector<8x16xf32>
    %c5 = arith.constant 5 : index
    %c0_27 = arith.constant 0 : index
    %c0_28 = arith.constant 0 : index
    %52 = vector.load %arg17[%c5, %c0_27, %c0_28] : memref<12x8x16xf32, #tpu.memory_space<vmem>>, vector<1x8x16xf32>
    %53 = vector.shape_cast %52 : vector<1x8x16xf32> to vector<8x16xf32>
    %54 = vector.shape_cast %51 : vector<8x16xf32> to vector<1x8x16xf32>
    tpu.vector_store %arg17[%c5, %c0_27, %c0_28], %54 {strides = array<i32>} : memref<12x8x16xf32, #tpu.memory_space<vmem>>, vector<1x8x16xf32>,
    %55 = vector.extract_strided_slice %30 {offsets = [0, 96], sizes = [8, 16], strides = [1, 1]} : vector<8x192xf32> to vector<8x16xf32>
    %c6 = arith.constant 6 : index
    %c0_29 = arith.constant 0 : index
    %c0_30 = arith.constant 0 : index
    %56 = vector.load %arg17[%c6, %c0_29, %c0_30] : memref<12x8x16xf32, #tpu.memory_space<vmem>>, vector<1x8x16xf32>
    %57 = vector.shape_cast %56 : vector<1x8x16xf32> to vector<8x16xf32>
    %58 = vector.shape_cast %55 : vector<8x16xf32> to vector<1x8x16xf32>
    tpu.vector_store %arg17[%c6, %c0_29, %c0_30], %58 {strides = array<i32>} : memref<12x8x16xf32, #tpu.memory_space<vmem>>, vector<1x8x16xf32>,
    %59 = vector.extract_strided_slice %30 {offsets = [0, 112], sizes = [8, 16], strides = [1, 1]} : vector<8x192xf32> to vector<8x16xf32>
    %c7 = arith.constant 7 : index
    %c0_31 = arith.constant 0 : index
    %c0_32 = arith.constant 0 : index
    %60 = vector.load %arg17[%c7, %c0_31, %c0_32] : memref<12x8x16xf32, #tpu.memory_space<vmem>>, vector<1x8x16xf32>
    %61 = vector.shape_cast %60 : vector<1x8x16xf32> to vector<8x16xf32>
    %62 = vector.shape_cast %59 : vector<8x16xf32> to vector<1x8x16xf32>
    tpu.vector_store %arg17[%c7, %c0_31, %c0_32], %62 {strides = array<i32>} : memref<12x8x16xf32, #tpu.memory_space<vmem>>, vector<1x8x16xf32>,
    %63 = vector.extract_strided_slice %30 {offsets = [0, 128], sizes = [8, 16], strides = [1, 1]} : vector<8x192xf32> to vector<8x16xf32>
    %c8 = arith.constant 8 : index
    %c0_33 = arith.constant 0 : index
    %c0_34 = arith.constant 0 : index
    %64 = vector.load %arg17[%c8, %c0_33, %c0_34] : memref<12x8x16xf32, #tpu.memory_space<vmem>>, vector<1x8x16xf32>
    %65 = vector.shape_cast %64 : vector<1x8x16xf32> to vector<8x16xf32>
    %66 = vector.shape_cast %63 : vector<8x16xf32> to vector<1x8x16xf32>
    tpu.vector_store %arg17[%c8, %c0_33, %c0_34], %66 {strides = array<i32>} : memref<12x8x16xf32, #tpu.memory_space<vmem>>, vector<1x8x16xf32>,
    %67 = vector.extract_strided_slice %30 {offsets = [0, 144], sizes = [8, 16], strides = [1, 1]} : vector<8x192xf32> to vector<8x16xf32>
    %c9 = arith.constant 9 : index
    %c0_35 = arith.constant 0 : index
    %c0_36 = arith.constant 0 : index
    %68 = vector.load %arg17[%c9, %c0_35, %c0_36] : memref<12x8x16xf32, #tpu.memory_space<vmem>>, vector<1x8x16xf32>
    %69 = vector.shape_cast %68 : vector<1x8x16xf32> to vector<8x16xf32>
    %70 = vector.shape_cast %67 : vector<8x16xf32> to vector<1x8x16xf32>
    tpu.vector_store %arg17[%c9, %c0_35, %c0_36], %70 {strides = array<i32>} : memref<12x8x16xf32, #tpu.memory_space<vmem>>, vector<1x8x16xf32>,
    %71 = vector.extract_strided_slice %30 {offsets = [0, 160], sizes = [8, 16], strides = [1, 1]} : vector<8x192xf32> to vector<8x16xf32>
    %c10 = arith.constant 10 : index
    %c0_37 = arith.constant 0 : index
    %c0_38 = arith.constant 0 : index
    %72 = vector.load %arg17[%c10, %c0_37, %c0_38] : memref<12x8x16xf32, #tpu.memory_space<vmem>>, vector<1x8x16xf32>
    %73 = vector.shape_cast %72 : vector<1x8x16xf32> to vector<8x16xf32>
    %74 = vector.shape_cast %71 : vector<8x16xf32> to vector<1x8x16xf32>
    tpu.vector_store %arg17[%c10, %c0_37, %c0_38], %74 {strides = array<i32>} : memref<12x8x16xf32, #tpu.memory_space<vmem>>, vector<1x8x16xf32>,
    %75 = vector.extract_strided_slice %30 {offsets = [0, 176], sizes = [8, 16], strides = [1, 1]} : vector<8x192xf32> to vector<8x16xf32>
    %c11 = arith.constant 11 : index
    %c0_39 = arith.constant 0 : index
    %c0_40 = arith.constant 0 : index
    %76 = vector.load %arg17[%c11, %c0_39, %c0_40] : memref<12x8x16xf32, #tpu.memory_space<vmem>>, vector<1x8x16xf32>
    %77 = vector.shape_cast %76 : vector<1x8x16xf32> to vector<8x16xf32>
    %78 = vector.shape_cast %75 : vector<8x16xf32> to vector<1x8x16xf32>
    tpu.vector_store %arg17[%c11, %c0_39, %c0_40], %78 {strides = array<i32>} : memref<12x8x16xf32, #tpu.memory_space<vmem>>, vector<1x8x16xf32>,
    %c0_41 = arith.constant 0 : index
    %c0_42 = arith.constant 0 : index
    %c0_43 = arith.constant 0 : index
    %79 = vector.load %arg17[%c0_41, %c0_42, %c0_43] : memref<12x8x16xf32, #tpu.memory_space<vmem>>, vector<4x8x16xf32>
    %c4_44 = arith.constant 4 : index
    %c0_45 = arith.constant 0 : index
    %c0_46 = arith.constant 0 : index
    %80 = vector.load %arg17[%c4_44, %c0_45, %c0_46] : memref<12x8x16xf32, #tpu.memory_space<vmem>>, vector<4x8x16xf32>
    %c8_47 = arith.constant 8 : index
    %c0_48 = arith.constant 0 : index
    %c0_49 = arith.constant 0 : index
    %81 = vector.load %arg17[%c8_47, %c0_48, %c0_49] : memref<12x8x16xf32, #tpu.memory_space<vmem>>, vector<4x8x16xf32>
    "tpu.trace_start"() <{level = 10 : i32, message = "hnd,hmd->hnm"}> : () -> ()
    %cst_50 = arith.constant dense<0.000000e+00> : vector<4x8x8xf32>
    %82 = tpu.matmul %79, %80, %cst_50 {dimension_numbers = #tpu.dot_dimension_numbers<[2], [2], [1], [1], [0, 0, 0, 1, 1, 1], [0], [0]>} : vector<4x8x16xf32>, vector<4x8x16xf32>, vector<4x8x8xf32> -> vector<4x8x8xf32>
    "tpu.trace_stop"() : () -> ()
    %cst_51 = arith.constant dense<0xFF800000> : vector<4x8xf32>
    %83 = vector.multi_reduction <maximumf>, %82, %cst_51 [2] : vector<4x8x8xf32> to vector<4x8xf32>
    %84 = vector.shape_cast %83 : vector<4x8xf32> to vector<4x8x1xf32>
    %85 = vector.broadcast %84 : vector<4x8x1xf32> to vector<4x8x8xf32>
    %86 = arith.subf %82, %85 : vector<4x8x8xf32>
    %87 = math.exp %86 : vector<4x8x8xf32>
    %cst_52 = arith.constant dense<0.000000e+00> : vector<4x8xf32>
    %88 = vector.multi_reduction <add>, %87, %cst_52 [2] : vector<4x8x8xf32> to vector<4x8xf32>
    %89 = vector.shape_cast %88 : vector<4x8xf32> to vector<4x8x1xf32>
    %90 = tpu.reciprocal %89 {approx = true} : vector<4x8x1xf32> -> vector<4x8x1xf32>
    %91 = vector.broadcast %90 : vector<4x8x1xf32> to vector<4x8x8xf32>
    %92 = arith.mulf %87, %91 : vector<4x8x8xf32>
    "tpu.trace_start"() <{level = 10 : i32, message = "hnm,hmd->hnd"}> : () -> ()
    %cst_53 = arith.constant dense<0.000000e+00> : vector<4x8x16xf32>
    %93 = tpu.matmul %92, %81, %cst_53 {dimension_numbers = #tpu.dot_dimension_numbers<[2], [1], [1], [2], [0, 0, 0, 1, 1, 2], [0], [0]>} : vector<4x8x8xf32>, vector<4x8x16xf32>, vector<4x8x16xf32> -> vector<4x8x16xf32>
    "tpu.trace_stop"() : () -> ()
    %94 = vector.extract_strided_slice %93 {offsets = [0, 0, 0], sizes = [1, 8, 16], strides = [1, 1, 1]} : vector<4x8x16xf32> to vector<1x8x16xf32>
    %95 = vector.shape_cast %94 : vector<1x8x16xf32> to vector<8x16xf32>
    %c0_54 = arith.constant 0 : index
    %c0_55 = arith.constant 0 : index
    %96 = vector.load %arg18[%c0_54, %c0_55] : memref<8x64xf32, #tpu.memory_space<vmem>>, vector<8x16xf32>
    tpu.vector_store %arg18[%c0_54, %c0_55], %95 {strides = array<i32>} : memref<8x64xf32, #tpu.memory_space<vmem>>, vector<8x16xf32>,
    %97 = vector.extract_strided_slice %93 {offsets = [1, 0, 0], sizes = [1, 8, 16], strides = [1, 1, 1]} : vector<4x8x16xf32> to vector<1x8x16xf32>
    %98 = vector.shape_cast %97 : vector<1x8x16xf32> to vector<8x16xf32>
    %c0_56 = arith.constant 0 : index
    %c16 = arith.constant 16 : index
    %99 = vector.load %arg18[%c0_56, %c16] : memref<8x64xf32, #tpu.memory_space<vmem>>, vector<8x16xf32>
    tpu.vector_store %arg18[%c0_56, %c16], %98 {strides = array<i32>} : memref<8x64xf32, #tpu.memory_space<vmem>>, vector<8x16xf32>,
    %100 = vector.extract_strided_slice %93 {offsets = [2, 0, 0], sizes = [1, 8, 16], strides = [1, 1, 1]} : vector<4x8x16xf32> to vector<1x8x16xf32>
    %101 = vector.shape_cast %100 : vector<1x8x16xf32> to vector<8x16xf32>
    %c0_57 = arith.constant 0 : index
    %c32 = arith.constant 32 : index
    %102 = vector.load %arg18[%c0_57, %c32] : memref<8x64xf32, #tpu.memory_space<vmem>>, vector<8x16xf32>
    tpu.vector_store %arg18[%c0_57, %c32], %101 {strides = array<i32>} : memref<8x64xf32, #tpu.memory_space<vmem>>, vector<8x16xf32>,
    %103 = vector.extract_strided_slice %93 {offsets = [3, 0, 0], sizes = [1, 8, 16], strides = [1, 1, 1]} : vector<4x8x16xf32> to vector<1x8x16xf32>
    %104 = vector.shape_cast %103 : vector<1x8x16xf32> to vector<8x16xf32>
    %c0_58 = arith.constant 0 : index
    %c48 = arith.constant 48 : index
    %105 = vector.load %arg18[%c0_58, %c48] : memref<8x64xf32, #tpu.memory_space<vmem>>, vector<8x16xf32>
    tpu.vector_store %arg18[%c0_58, %c48], %104 {strides = array<i32>} : memref<8x64xf32, #tpu.memory_space<vmem>>, vector<8x16xf32>,
    %c0_59 = arith.constant 0 : index
    %c0_60 = arith.constant 0 : index
    %106 = vector.load %arg18[%c0_59, %c0_60] : memref<8x64xf32, #tpu.memory_space<vmem>>, vector<8x64xf32>
    %c0_61 = arith.constant 0 : index
    %c0_62 = arith.constant 0 : index
    %c0_63 = arith.constant 0 : index
    %107 = vector.load %arg6[%c0_61, %c0_62, %c0_63] : memref<1x64x32xf32, #tpu.memory_space<vmem>>, vector<1x64x32xf32>
    %108 = vector.shape_cast %107 : vector<1x64x32xf32> to vector<64x32xf32>
    %cst_64 = arith.constant dense<0.000000e+00> : vector<8x32xf32>
    %109 = tpu.matmul %106, %108, %cst_64 {dimension_numbers = #tpu.dot_dimension_numbers<[1], [0], [0], [1], [0, 0, 1, 1], [], []>} : vector<8x64xf32>, vector<64x32xf32>, vector<8x32xf32> -> vector<8x32xf32>
    %c0_65 = arith.constant 0 : index
    %c0_66 = arith.constant 0 : index
    %c0_67 = arith.constant 0 : index
    %110 = vector.load %arg7[%c0_65, %c0_66, %c0_67] : memref<1x1x32xf32, #tpu.memory_space<vmem>>, vector<1x1x32xf32>
    %111 = vector.shape_cast %110 : vector<1x1x32xf32> to vector<1x32xf32>
    %112 = vector.broadcast %111 : vector<1x32xf32> to vector<8x32xf32>
    %113 = arith.addf %109, %112 : vector<8x32xf32>
    %114 = arith.addf %113, %3 : vector<8x32xf32>
    %c0_68 = arith.constant 0 : index
    %c0_69 = arith.constant 0 : index
    %c0_70 = arith.constant 0 : index
    %c0_71 = arith.constant 0 : index
    %115 = vector.load %arg14[%c0_68, %c0_69, %c0_70, %c0_71] : memref<1x1x8x32xf32, #tpu.memory_space<vmem>>, vector<1x1x8x32xf32>
    %116 = vector.shape_cast %115 : vector<1x1x8x32xf32> to vector<8x32xf32>
    %117 = vector.shape_cast %114 : vector<8x32xf32> to vector<1x1x8x32xf32>
    tpu.vector_store %arg14[%c0_68, %c0_69, %c0_70, %c0_71], %117 {strides = array<i32>} : memref<1x1x8x32xf32, #tpu.memory_space<vmem>>, vector<1x1x8x32xf32>,
    %c0_72 = arith.constant 0 : index
    %c0_73 = arith.constant 0 : index
    %c0_74 = arith.constant 0 : index
    %118 = vector.load %arg8[%c0_72, %c0_73, %c0_74] : memref<1x1x32xf32, #tpu.memory_space<vmem>>, vector<1x1x32xf32>
    %119 = vector.shape_cast %118 : vector<1x1x32xf32> to vector<1x32xf32>
    %c0_75 = arith.constant 0 : index
    %c0_76 = arith.constant 0 : index
    %c0_77 = arith.constant 0 : index
    %120 = vector.load %arg9[%c0_75, %c0_76, %c0_77] : memref<1x1x32xf32, #tpu.memory_space<vmem>>, vector<1x1x32xf32>
    %121 = vector.shape_cast %120 : vector<1x1x32xf32> to vector<1x32xf32>
    %cst_78 = arith.constant dense<0.000000e+00> : vector<8xf32>
    %122 = vector.multi_reduction <add>, %114, %cst_78 [1] : vector<8x32xf32> to vector<8xf32>
    %123 = vector.shape_cast %122 : vector<8xf32> to vector<8x1xf32>
    %cst_79 = arith.constant 3.200000e+01 : f32
    %124 = vector.broadcast %cst_79 : f32 to vector<8x1xf32>
    %125 = arith.divf %123, %124 : vector<8x1xf32>
    %126 = vector.broadcast %125 : vector<8x1xf32> to vector<8x32xf32>
    %127 = arith.subf %114, %126 : vector<8x32xf32>
    %128 = arith.mulf %127, %127 : vector<8x32xf32>
    %cst_80 = arith.constant dense<0.000000e+00> : vector<8xf32>
    %129 = vector.multi_reduction <add>, %128, %cst_80 [1] : vector<8x32xf32> to vector<8xf32>
    %130 = vector.shape_cast %129 : vector<8xf32> to vector<8x1xf32>
    %cst_81 = arith.constant 3.200000e+01 : f32
    %131 = vector.broadcast %cst_81 : f32 to vector<8x1xf32>
    %132 = arith.divf %130, %131 : vector<8x1xf32>
    %cst_82 = arith.constant 9.99999974E-6 : f32
    %133 = vector.broadcast %cst_82 : f32 to vector<8x1xf32>
    %134 = arith.addf %132, %133 : vector<8x1xf32>
    %135 = math.rsqrt %134 : vector<8x1xf32>
    %136 = vector.broadcast %135 : vector<8x1xf32> to vector<8x32xf32>
    %137 = arith.mulf %127, %136 : vector<8x32xf32>
    %138 = vector.broadcast %119 : vector<1x32xf32> to vector<8x32xf32>
    %139 = arith.mulf %137, %138 : vector<8x32xf32>
    %140 = vector.broadcast %121 : vector<1x32xf32> to vector<8x32xf32>
    %141 = arith.addf %139, %140 : vector<8x32xf32>
    %c0_83 = arith.constant 0 : index
    %c0_84 = arith.constant 0 : index
    %c0_85 = arith.constant 0 : index
    %142 = vector.load %arg10[%c0_83, %c0_84, %c0_85] : memref<1x32x64xf32, #tpu.memory_space<vmem>>, vector<1x32x64xf32>
    %143 = vector.shape_cast %142 : vector<1x32x64xf32> to vector<32x64xf32>
    %cst_86 = arith.constant dense<0.000000e+00> : vector<8x64xf32>
    %144 = tpu.matmul %141, %143, %cst_86 {dimension_numbers = #tpu.dot_dimension_numbers<[1], [0], [0], [1], [0, 0, 1, 1], [], []>} : vector<8x32xf32>, vector<32x64xf32>, vector<8x64xf32> -> vector<8x64xf32>
    %c0_87 = arith.constant 0 : index
    %c0_88 = arith.constant 0 : index
    %c0_89 = arith.constant 0 : index
    %145 = vector.load %arg11[%c0_87, %c0_88, %c0_89] : memref<1x1x64xf32, #tpu.memory_space<vmem>>, vector<1x1x64xf32>
    %146 = vector.shape_cast %145 : vector<1x1x64xf32> to vector<1x64xf32>
    %147 = vector.broadcast %146 : vector<1x64xf32> to vector<8x64xf32>
    %148 = arith.addf %144, %147 : vector<8x64xf32>
    %149 = arith.mulf %148, %148 : vector<8x64xf32>
    %150 = arith.mulf %148, %149 : vector<8x64xf32>
    %cst_90 = arith.constant 4.471500e-02 : f32
    %151 = vector.broadcast %cst_90 : f32 to vector<8x64xf32>
    %152 = arith.mulf %151, %150 : vector<8x64xf32>
    %153 = arith.addf %148, %152 : vector<8x64xf32>
    %cst_91 = arith.constant 0.797884583 : f32
    %154 = vector.broadcast %cst_91 : f32 to vector<8x64xf32>
    %155 = arith.mulf %154, %153 : vector<8x64xf32>
    %156 = math.tanh %155 : vector<8x64xf32>
    %cst_92 = arith.constant 1.000000e+00 : f32
    %157 = vector.broadcast %cst_92 : f32 to vector<8x64xf32>
    %158 = arith.addf %157, %156 : vector<8x64xf32>
    %cst_93 = arith.constant 5.000000e-01 : f32
    %159 = vector.broadcast %cst_93 : f32 to vector<8x64xf32>
    %160 = arith.mulf %159, %158 : vector<8x64xf32>
    %161 = arith.mulf %148, %160 : vector<8x64xf32>
    %c0_94 = arith.constant 0 : index
    %c0_95 = arith.constant 0 : index
    %c0_96 = arith.constant 0 : index
    %162 = vector.load %arg12[%c0_94, %c0_95, %c0_96] : memref<1x64x32xf32, #tpu.memory_space<vmem>>, vector<1x64x32xf32>
    %163 = vector.shape_cast %162 : vector<1x64x32xf32> to vector<64x32xf32>
    %cst_97 = arith.constant dense<0.000000e+00> : vector<8x32xf32>
    %164 = tpu.matmul %161, %163, %cst_97 {dimension_numbers = #tpu.dot_dimension_numbers<[1], [0], [0], [1], [0, 0, 1, 1], [], []>} : vector<8x64xf32>, vector<64x32xf32>, vector<8x32xf32> -> vector<8x32xf32>
    %c0_98 = arith.constant 0 : index
    %c0_99 = arith.constant 0 : index
    %c0_100 = arith.constant 0 : index
    %165 = vector.load %arg13[%c0_98, %c0_99, %c0_100] : memref<1x1x32xf32, #tpu.memory_space<vmem>>, vector<1x1x32xf32>
    %166 = vector.shape_cast %165 : vector<1x1x32xf32> to vector<1x32xf32>
    %167 = vector.broadcast %166 : vector<1x32xf32> to vector<8x32xf32>
    %168 = arith.addf %164, %167 : vector<8x32xf32>
    %169 = arith.addf %168, %114 : vector<8x32xf32>
    %c0_101 = arith.constant 0 : index
    %c0_102 = arith.constant 0 : index
    %c0_103 = arith.constant 0 : index
    %c0_104 = arith.constant 0 : index
    %170 = vector.load %arg15[%c0_101, %c0_102, %c0_103, %c0_104] : memref<1x1x8x32xf32, #tpu.memory_space<vmem>>, vector<1x1x8x32xf32>
    %171 = vector.shape_cast %170 : vector<1x1x8x32xf32> to vector<8x32xf32>
    %172 = vector.shape_cast %169 : vector<8x32xf32> to vector<1x1x8x32xf32>
    tpu.vector_store %arg15[%c0_101, %c0_102, %c0_103, %c0_104], %172 {strides = array<i32>} : memref<1x1x8x32xf32, #tpu.memory_space<vmem>>, vector<1x1x8x32xf32>,
    %c0_105 = arith.constant 0 : index
    %c0_106 = arith.constant 0 : index
    %173 = vector.load %arg16[%c0_105, %c0_106] : memref<8x32xf32, #tpu.memory_space<vmem>>, vector<8x32xf32>
    tpu.vector_store %arg16[%c0_105, %c0_106], %169 {strides = array<i32>} : memref<8x32xf32, #tpu.memory_space<vmem>>, vector<8x32xf32>,
    return
  }
  func.func @transform_0(%arg0: i32, %arg1: i32) -> (i32, i32, i32) {
    %c0_i32 = arith.constant 0 : i32
    %c0_i32_0 = arith.constant 0 : i32
    %c0_i32_1 = arith.constant 0 : i32
    return %arg0, %c0_i32, %c0_i32_0 : i32, i32, i32
  }
  func.func @transform_1(%arg0: i32, %arg1: i32) -> (i32, i32, i32) {
    %c0_i32 = arith.constant 0 : i32
    %c0_i32_0 = arith.constant 0 : i32
    %c0_i32_1 = arith.constant 0 : i32
    return %arg1, %c0_i32, %c0_i32_0 : i32, i32, i32
  }
  func.func @transform_2(%arg0: i32, %arg1: i32) -> (i32, i32, i32) {
    %c0_i32 = arith.constant 0 : i32
    %c0_i32_0 = arith.constant 0 : i32
    %c0_i32_1 = arith.constant 0 : i32
    return %arg1, %c0_i32, %c0_i32_0 : i32, i32, i32
  }
  func.func @transform_3(%arg0: i32, %arg1: i32) -> (i32, i32, i32) {
    %c0_i32 = arith.constant 0 : i32
    %c0_i32_0 = arith.constant 0 : i32
    %c0_i32_1 = arith.constant 0 : i32
    return %arg1, %c0_i32, %c0_i32_0 : i32, i32, i32
  }
  func.func @transform_4(%arg0: i32, %arg1: i32) -> (i32, i32, i32) {
    %c0_i32 = arith.constant 0 : i32
    %c0_i32_0 = arith.constant 0 : i32
    %c0_i32_1 = arith.constant 0 : i32
    return %arg1, %c0_i32, %c0_i32_0 : i32, i32, i32
  }
  func.func @transform_5(%arg0: i32, %arg1: i32) -> (i32, i32, i32) {
    %c0_i32 = arith.constant 0 : i32
    %c0_i32_0 = arith.constant 0 : i32
    %c0_i32_1 = arith.constant 0 : i32
    return %arg1, %c0_i32, %c0_i32_0 : i32, i32, i32
  }
  func.func @transform_6(%arg0: i32, %arg1: i32) -> (i32, i32, i32) {
    %c0_i32 = arith.constant 0 : i32
    %c0_i32_0 = arith.constant 0 : i32
    %c0_i32_1 = arith.constant 0 : i32
    return %arg1, %c0_i32, %c0_i32_0 : i32, i32, i32
  }
  func.func @transform_7(%arg0: i32, %arg1: i32) -> (i32, i32, i32) {
    %c0_i32 = arith.constant 0 : i32
    %c0_i32_0 = arith.constant 0 : i32
    %c0_i32_1 = arith.constant 0 : i32
    return %arg1, %c0_i32, %c0_i32_0 : i32, i32, i32
  }
  func.func @transform_8(%arg0: i32, %arg1: i32) -> (i32, i32, i32) {
    %c0_i32 = arith.constant 0 : i32
    %c0_i32_0 = arith.constant 0 : i32
    %c0_i32_1 = arith.constant 0 : i32
    return %arg1, %c0_i32, %c0_i32_0 : i32, i32, i32
  }
  func.func @transform_9(%arg0: i32, %arg1: i32) -> (i32, i32, i32) {
    %c0_i32 = arith.constant 0 : i32
    %c0_i32_0 = arith.constant 0 : i32
    %c0_i32_1 = arith.constant 0 : i32
    return %arg1, %c0_i32, %c0_i32_0 : i32, i32, i32
  }
  func.func @transform_10(%arg0: i32, %arg1: i32) -> (i32, i32, i32) {
    %c0_i32 = arith.constant 0 : i32
    %c0_i32_0 = arith.constant 0 : i32
    %c0_i32_1 = arith.constant 0 : i32
    return %arg1, %c0_i32, %c0_i32_0 : i32, i32, i32
  }
  func.func @transform_11(%arg0: i32, %arg1: i32) -> (i32, i32, i32) {
    %c0_i32 = arith.constant 0 : i32
    %c0_i32_0 = arith.constant 0 : i32
    %c0_i32_1 = arith.constant 0 : i32
    return %arg1, %c0_i32, %c0_i32_0 : i32, i32, i32
  }
  func.func @transform_12(%arg0: i32, %arg1: i32) -> (i32, i32, i32, i32) {
    %c0_i32 = arith.constant 0 : i32
    %c0_i32_0 = arith.constant 0 : i32
    %c0_i32_1 = arith.constant 0 : i32
    return %arg1, %arg0, %c0_i32, %c0_i32_0 : i32, i32, i32, i32
  }
  func.func @transform_13(%arg0: i32, %arg1: i32) -> (i32, i32, i32, i32) {
    %c0_i32 = arith.constant 0 : i32
    %c0_i32_0 = arith.constant 0 : i32
    %c0_i32_1 = arith.constant 0 : i32
    return %arg1, %arg0, %c0_i32, %c0_i32_0 : i32, i32, i32, i32
  }
}

</mosaic_0001>

<llo_original>
// kernel: transformer_forward_pallas.1
$region0: #{transformer_forward_pallas.1}
  #allocation0 [shape = 'u32[]', space=smem, size = 0x4, offset = 0x4, fixed_abs, tag = 'smem constant byte address 0x4 - core index']
  #allocation1 [shape = 'u32[144,128]{1,0:T(1,128)}', space=vmem, size = 0x12000, scoped, tag = 'internal scratch']
  #allocation2 [shape = 'f32[8,32]{1,0:T(8,128)}', space=vmem, size = 0x1000, scoped, tag = 'scratch operand']
  #allocation3 [shape = 'f32[12,8,16]{2,1,0:T(8,128)}', space=vmem, size = 0xc000, scoped, tag = 'scratch operand']
  #allocation4 [shape = 'f32[8,64]{1,0:T(8,128)}', space=vmem, size = 0x1000, scoped, tag = 'scratch operand']
  %s0 = inlined_call_operand.vmem [shape: f32[2,8,32], index: 0, kind: input, shape index: {}]
  %s1 = inlined_call_operand.vmem [shape: f32[2,1,32], index: 1, kind: input, shape index: {}]
  %s2 = inlined_call_operand.vmem [shape: f32[2,1,32], index: 2, kind: input, shape index: {}]
  %s3 = inlined_call_operand.vmem [shape: f32[2,32,192], index: 3, kind: input, shape index: {}]
  %s4 = inlined_call_operand.vmem [shape: f32[2,64,32], index: 4, kind: input, shape index: {}]
  %s5 = inlined_call_operand.vmem [shape: f32[2,1,32], index: 5, kind: input, shape index: {}]
  %s6 = inlined_call_operand.vmem [shape: f32[2,1,32], index: 6, kind: input, shape index: {}]
  %s7 = inlined_call_operand.vmem [shape: f32[2,1,32], index: 7, kind: input, shape index: {}]
  %s8 = inlined_call_operand.vmem [shape: f32[2,32,64], index: 8, kind: input, shape index: {}]
  %s9 = inlined_call_operand.vmem [shape: f32[2,1,64], index: 9, kind: input, shape index: {}]
  %s10 = inlined_call_operand.vmem [shape: f32[2,64,32], index: 10, kind: input, shape index: {}]
  %s11 = inlined_call_operand.vmem [shape: f32[2,1,32], index: 11, kind: input, shape index: {}]
  %s12 = inlined_call_operand.vmem [shape: f32[2,2,8,32], index: 12, kind: output, shape index: {0}]
  %s13 = inlined_call_operand.vmem [shape: f32[2,2,8,32], index: 13, kind: output, shape index: {1}]
  %14 = xla_tuple %s12, %s13
  %s15 = sld [smem:[#allocation0]]
  $region93: #{transformer_forward_pallas.1} parent=0
    _
  %s17 = ssub.s32 1, %s15
  %s18 = scalar_select 0, %s17, %s15
  loop: start=0, step=1, limit=6
  $region2: #{transformer_forward_pallas.1} parent=0 // loop_pre_header
    _
  $region3: #{transformer_forward_pallas.1} parent=0 // loop_header
    %s20 = sphi 0, %s24
    %p21 = scmp.ge.s32.totalorder %s20, 6
    %s27 = sphi 0, %s39
    %s28 = sphi 0, %s35
    %s29 = sphi 0, %s27
    %s30 = sphi 0, %s28
    %s31 = sphi 0, %s29
    %s32 = sphi 0, %s30
    %s42 = sphi 0, %s44
    %s45 = sphi 0, %s42
    %s46 = sphi 0, %s45
    %s62 = sphi 0, %s46
    %s68 = sphi 0, %s70
    %s71 = sphi 0, %s68
    %s72 = sphi 0, %s71
    %s88 = sphi 0, %s72
    %s94 = sphi 0, %s96
    %s97 = sphi 0, %s94
    %s98 = sphi 0, %s97
    %s114 = sphi 0, %s98
    %s120 = sphi 0, %s122
    %s123 = sphi 0, %s120
    %s124 = sphi 0, %s123
    %s140 = sphi 0, %s124
    %s146 = sphi 0, %s148
    %s149 = sphi 0, %s146
    %s150 = sphi 0, %s149
    %s166 = sphi 0, %s150
    %s172 = sphi 0, %s174
    %s175 = sphi 0, %s172
    %s176 = sphi 0, %s175
    %s192 = sphi 0, %s176
    %s198 = sphi 0, %s200
    %s201 = sphi 0, %s198
    %s202 = sphi 0, %s201
    %s218 = sphi 0, %s202
    %s224 = sphi 0, %s226
    %s227 = sphi 0, %s224
    %s228 = sphi 0, %s227
    %s244 = sphi 0, %s228
    %s250 = sphi 0, %s252
    %s253 = sphi 0, %s250
    %s254 = sphi 0, %s253
    %s270 = sphi 0, %s254
    %s276 = sphi 0, %s278
    %s279 = sphi 0, %s276
    %s280 = sphi 0, %s279
    %s296 = sphi 0, %s280
    %s302 = sphi 0, %s304
    %s305 = sphi 0, %s302
    %s306 = sphi 0, %s305
    %s322 = sphi 0, %s306
    %s328 = sphi 0, %s330
    %s331 = sphi 0, %s328
    %s332 = sphi 0, %s331
    %s348 = sphi 0, %s332
    %s356 = sphi 0, %s358
    %s359 = sphi 0, %s356
    %s360 = sphi 0, %s359
    %s376 = sphi 0, %s360
    %s384 = sphi 0, %s386
    %s387 = sphi 0, %s384
    %s388 = sphi 0, %s387
    %s404 = sphi 0, %s388
  $region4: #{transformer_forward_pallas.1} parent=0 // loop_header_branch
    %23 = sbr.rel (%p21) target = $region8
  $region5: #{transformer_forward_pallas.1} parent=0 // loop_body
    %s25 = ssub.s32 %s20, 1
    %s26 = ssub.s32 %s20, 2
    %s33 = sadd.s32 1, %s28
    %p34 = scmp.ge.s32.totalorder %s33, 2
    %s35 = scalar_select %p34, 0, %s33
    %s36 = sadd.s32 1, %s27
    %s37 = scalar_select %p34, %s36, %s27
    %p38 = scmp.ge.s32.totalorder %s37, 2
    %s39 = scalar_select %p38, 0, %s37
    %s40 = ssub.s32 %s27, %s39
    %p41 = scmp.eq.s32.totalorder %s40, 0
    %s43 = sadd.s32 %s42, 1
    %s44 = scalar_select %p41, %s42, %s43
    %p47 = pneg %p41
    %p48 = scmp.eq.s32.totalorder %s20, 3
    %p49 = por %p47, %p48
    %p50 = scmp.ne.s32.totalorder %s42, %s45
    %p51 = scmp.eq.s32.totalorder %s20, 0
    %p52 = por %p50, %p51
    %p53 = scmp.ne.s32.totalorder %s42, %s45
    %p54 = scmp.eq.s32.totalorder %s25, 3
    %p55 = por %p53, %p54
    %p56 = scmp.ne.s32.totalorder %s45, %s46
    %p57 = scmp.eq.s32.totalorder %s25, 0
    %p58 = por %p56, %p57
    %p59 = scmp.ne.s32.totalorder %s45, %s46
    %p60 = scmp.eq.s32.totalorder %s26, 3
    %p61 = por %p59, %p60
    %p63 = scmp.ne.s32.totalorder %s46, %s62
    %p64 = scmp.eq.s32.totalorder %s26, 0
    %p65 = por %p63, %p64
    %s66 = ssub.s32 %s28, %s35
    %p67 = scmp.eq.s32.totalorder %s66, 0
    %s69 = sadd.s32 %s68, 1
    %s70 = scalar_select %p67, %s68, %s69
    %p73 = pneg %p67
    %p74 = scmp.eq.s32.totalorder %s20, 3
    %p75 = por %p73, %p74
    %p76 = scmp.ne.s32.totalorder %s68, %s71
    %p77 = scmp.eq.s32.totalorder %s20, 0
    %p78 = por %p76, %p77
    %p79 = scmp.ne.s32.totalorder %s68, %s71
    %p80 = scmp.eq.s32.totalorder %s25, 3
    %p81 = por %p79, %p80
    %p82 = scmp.ne.s32.totalorder %s71, %s72
    %p83 = scmp.eq.s32.totalorder %s25, 0
    %p84 = por %p82, %p83
    %p85 = scmp.ne.s32.totalorder %s71, %s72
    %p86 = scmp.eq.s32.totalorder %s26, 3
    %p87 = por %p85, %p86
    %p89 = scmp.ne.s32.totalorder %s72, %s88
    %p90 = scmp.eq.s32.totalorder %s26, 0
    %p91 = por %p89, %p90
    %s92 = ssub.s32 %s28, %s35
    %p93 = scmp.eq.s32.totalorder %s92, 0
    %s95 = sadd.s32 %s94, 1
    %s96 = scalar_select %p93, %s94, %s95
    %p99 = pneg %p93
    %p100 = scmp.eq.s32.totalorder %s20, 3
    %p101 = por %p99, %p100
    %p102 = scmp.ne.s32.totalorder %s94, %s97
    %p103 = scmp.eq.s32.totalorder %s20, 0
    %p104 = por %p102, %p103
    %p105 = scmp.ne.s32.totalorder %s94, %s97
    %p106 = scmp.eq.s32.totalorder %s25, 3
    %p107 = por %p105, %p106
    %p108 = scmp.ne.s32.totalorder %s97, %s98
    %p109 = scmp.eq.s32.totalorder %s25, 0
    %p110 = por %p108, %p109
    %p111 = scmp.ne.s32.totalorder %s97, %s98
    %p112 = scmp.eq.s32.totalorder %s26, 3
    %p113 = por %p111, %p112
    %p115 = scmp.ne.s32.totalorder %s98, %s114
    %p116 = scmp.eq.s32.totalorder %s26, 0
    %p117 = por %p115, %p116
    %s118 = ssub.s32 %s28, %s35
    %p119 = scmp.eq.s32.totalorder %s118, 0
    %s121 = sadd.s32 %s120, 1
    %s122 = scalar_select %p119, %s120, %s121
    %p125 = pneg %p119
    %p126 = scmp.eq.s32.totalorder %s20, 3
    %p127 = por %p125, %p126
    %p128 = scmp.ne.s32.totalorder %s120, %s123
    %p129 = scmp.eq.s32.totalorder %s20, 0
    %p130 = por %p128, %p129
    %p131 = scmp.ne.s32.totalorder %s120, %s123
    %p132 = scmp.eq.s32.totalorder %s25, 3
    %p133 = por %p131, %p132
    %p134 = scmp.ne.s32.totalorder %s123, %s124
    %p135 = scmp.eq.s32.totalorder %s25, 0
    %p136 = por %p134, %p135
    %p137 = scmp.ne.s32.totalorder %s123, %s124
    %p138 = scmp.eq.s32.totalorder %s26, 3
    %p139 = por %p137, %p138
    %p141 = scmp.ne.s32.totalorder %s124, %s140
    %p142 = scmp.eq.s32.totalorder %s26, 0
    %p143 = por %p141, %p142
    %s144 = ssub.s32 %s28, %s35
    %p145 = scmp.eq.s32.totalorder %s144, 0
    %s147 = sadd.s32 %s146, 1
    %s148 = scalar_select %p145, %s146, %s147
    %p151 = pneg %p145
    %p152 = scmp.eq.s32.totalorder %s20, 3
    %p153 = por %p151, %p152
    %p154 = scmp.ne.s32.totalorder %s146, %s149
    %p155 = scmp.eq.s32.totalorder %s20, 0
    %p156 = por %p154, %p155
    %p157 = scmp.ne.s32.totalorder %s146, %s149
    %p158 = scmp.eq.s32.totalorder %s25, 3
    %p159 = por %p157, %p158
    %p160 = scmp.ne.s32.totalorder %s149, %s150
    %p161 = scmp.eq.s32.totalorder %s25, 0
    %p162 = por %p160, %p161
    %p163 = scmp.ne.s32.totalorder %s149, %s150
    %p164 = scmp.eq.s32.totalorder %s26, 3
    %p165 = por %p163, %p164
    %p167 = scmp.ne.s32.totalorder %s150, %s166
    %p168 = scmp.eq.s32.totalorder %s26, 0
    %p169 = por %p167, %p168
    %s170 = ssub.s32 %s28, %s35
    %p171 = scmp.eq.s32.totalorder %s170, 0
    %s173 = sadd.s32 %s172, 1
    %s174 = scalar_select %p171, %s172, %s173
    %p177 = pneg %p171
    %p178 = scmp.eq.s32.totalorder %s20, 3
    %p179 = por %p177, %p178
    %p180 = scmp.ne.s32.totalorder %s172, %s175
    %p181 = scmp.eq.s32.totalorder %s20, 0
    %p182 = por %p180, %p181
    %p183 = scmp.ne.s32.totalorder %s172, %s175
    %p184 = scmp.eq.s32.totalorder %s25, 3
    %p185 = por %p183, %p184
    %p186 = scmp.ne.s32.totalorder %s175, %s176
    %p187 = scmp.eq.s32.totalorder %s25, 0
    %p188 = por %p186, %p187
    %p189 = scmp.ne.s32.totalorder %s175, %s176
    %p190 = scmp.eq.s32.totalorder %s26, 3
    %p191 = por %p189, %p190
    %p193 = scmp.ne.s32.totalorder %s176, %s192
    %p194 = scmp.eq.s32.totalorder %s26, 0
    %p195 = por %p193, %p194
    %s196 = ssub.s32 %s28, %s35
    %p197 = scmp.eq.s32.totalorder %s196, 0
    %s199 = sadd.s32 %s198, 1
    %s200 = scalar_select %p197, %s198, %s199
    %p203 = pneg %p197
    %p204 = scmp.eq.s32.totalorder %s20, 3
    %p205 = por %p203, %p204
    %p206 = scmp.ne.s32.totalorder %s198, %s201
    %p207 = scmp.eq.s32.totalorder %s20, 0
    %p208 = por %p206, %p207
    %p209 = scmp.ne.s32.totalorder %s198, %s201
    %p210 = scmp.eq.s32.totalorder %s25, 3
    %p211 = por %p209, %p210
    %p212 = scmp.ne.s32.totalorder %s201, %s202
    %p213 = scmp.eq.s32.totalorder %s25, 0
    %p214 = por %p212, %p213
    %p215 = scmp.ne.s32.totalorder %s201, %s202
    %p216 = scmp.eq.s32.totalorder %s26, 3
    %p217 = por %p215, %p216
    %p219 = scmp.ne.s32.totalorder %s202, %s218
    %p220 = scmp.eq.s32.totalorder %s26, 0
    %p221 = por %p219, %p220
    %s222 = ssub.s32 %s28, %s35
    %p223 = scmp.eq.s32.totalorder %s222, 0
    %s225 = sadd.s32 %s224, 1
    %s226 = scalar_select %p223, %s224, %s225
    %p229 = pneg %p223
    %p230 = scmp.eq.s32.totalorder %s20, 3
    %p231 = por %p229, %p230
    %p232 = scmp.ne.s32.totalorder %s224, %s227
    %p233 = scmp.eq.s32.totalorder %s20, 0
    %p234 = por %p232, %p233
    %p235 = scmp.ne.s32.totalorder %s224, %s227
    %p236 = scmp.eq.s32.totalorder %s25, 3
    %p237 = por %p235, %p236
    %p238 = scmp.ne.s32.totalorder %s227, %s228
    %p239 = scmp.eq.s32.totalorder %s25, 0
    %p240 = por %p238, %p239
    %p241 = scmp.ne.s32.totalorder %s227, %s228
    %p242 = scmp.eq.s32.totalorder %s26, 3
    %p243 = por %p241, %p242
    %p245 = scmp.ne.s32.totalorder %s228, %s244
    %p246 = scmp.eq.s32.totalorder %s26, 0
    %p247 = por %p245, %p246
    %s248 = ssub.s32 %s28, %s35
    %p249 = scmp.eq.s32.totalorder %s248, 0
    %s251 = sadd.s32 %s250, 1
    %s252 = scalar_select %p249, %s250, %s251
    %p255 = pneg %p249
    %p256 = scmp.eq.s32.totalorder %s20, 3
    %p257 = por %p255, %p256
    %p258 = scmp.ne.s32.totalorder %s250, %s253
    %p259 = scmp.eq.s32.totalorder %s20, 0
    %p260 = por %p258, %p259
    %p261 = scmp.ne.s32.totalorder %s250, %s253
    %p262 = scmp.eq.s32.totalorder %s25, 3
    %p263 = por %p261, %p262
    %p264 = scmp.ne.s32.totalorder %s253, %s254
    %p265 = scmp.eq.s32.totalorder %s25, 0
    %p266 = por %p264, %p265
    %p267 = scmp.ne.s32.totalorder %s253, %s254
    %p268 = scmp.eq.s32.totalorder %s26, 3
    %p269 = por %p267, %p268
    %p271 = scmp.ne.s32.totalorder %s254, %s270
    %p272 = scmp.eq.s32.totalorder %s26, 0
    %p273 = por %p271, %p272
    %s274 = ssub.s32 %s28, %s35
    %p275 = scmp.eq.s32.totalorder %s274, 0
    %s277 = sadd.s32 %s276, 1
    %s278 = scalar_select %p275, %s276, %s277
    %p281 = pneg %p275
    %p282 = scmp.eq.s32.totalorder %s20, 3
    %p283 = por %p281, %p282
    %p284 = scmp.ne.s32.totalorder %s276, %s279
    %p285 = scmp.eq.s32.totalorder %s20, 0
    %p286 = por %p284, %p285
    %p287 = scmp.ne.s32.totalorder %s276, %s279
    %p288 = scmp.eq.s32.totalorder %s25, 3
    %p289 = por %p287, %p288
    %p290 = scmp.ne.s32.totalorder %s279, %s280
    %p291 = scmp.eq.s32.totalorder %s25, 0
    %p292 = por %p290, %p291
    %p293 = scmp.ne.s32.totalorder %s279, %s280
    %p294 = scmp.eq.s32.totalorder %s26, 3
    %p295 = por %p293, %p294
    %p297 = scmp.ne.s32.totalorder %s280, %s296
    %p298 = scmp.eq.s32.totalorder %s26, 0
    %p299 = por %p297, %p298
    %s300 = ssub.s32 %s28, %s35
    %p301 = scmp.eq.s32.totalorder %s300, 0
    %s303 = sadd.s32 %s302, 1
    %s304 = scalar_select %p301, %s302, %s303
    %p307 = pneg %p301
    %p308 = scmp.eq.s32.totalorder %s20, 3
    %p309 = por %p307, %p308
    %p310 = scmp.ne.s32.totalorder %s302, %s305
    %p311 = scmp.eq.s32.totalorder %s20, 0
    %p312 = por %p310, %p311
    %p313 = scmp.ne.s32.totalorder %s302, %s305
    %p314 = scmp.eq.s32.totalorder %s25, 3
    %p315 = por %p313, %p314
    %p316 = scmp.ne.s32.totalorder %s305, %s306
    %p317 = scmp.eq.s32.totalorder %s25, 0
    %p318 = por %p316, %p317
    %p319 = scmp.ne.s32.totalorder %s305, %s306
    %p320 = scmp.eq.s32.totalorder %s26, 3
    %p321 = por %p319, %p320
    %p323 = scmp.ne.s32.totalorder %s306, %s322
    %p324 = scmp.eq.s32.totalorder %s26, 0
    %p325 = por %p323, %p324
    %s326 = ssub.s32 %s28, %s35
    %p327 = scmp.eq.s32.totalorder %s326, 0
    %s329 = sadd.s32 %s328, 1
    %s330 = scalar_select %p327, %s328, %s329
    %p333 = pneg %p327
    %p334 = scmp.eq.s32.totalorder %s20, 3
    %p335 = por %p333, %p334
    %p336 = scmp.ne.s32.totalorder %s328, %s331
    %p337 = scmp.eq.s32.totalorder %s20, 0
    %p338 = por %p336, %p337
    %p339 = scmp.ne.s32.totalorder %s328, %s331
    %p340 = scmp.eq.s32.totalorder %s25, 3
    %p341 = por %p339, %p340
    %p342 = scmp.ne.s32.totalorder %s331, %s332
    %p343 = scmp.eq.s32.totalorder %s25, 0
    %p344 = por %p342, %p343
    %p345 = scmp.ne.s32.totalorder %s331, %s332
    %p346 = scmp.eq.s32.totalorder %s26, 3
    %p347 = por %p345, %p346
    %p349 = scmp.ne.s32.totalorder %s332, %s348
    %p350 = scmp.eq.s32.totalorder %s26, 0
    %p351 = por %p349, %p350
    %s352 = ssub.s32 %s28, %s35
    %s353 = ssub.s32 %s27, %s39
    %s354 = sor.u32 %s352, %s353
    %p355 = scmp.eq.s32.totalorder %s354, 0
    %s357 = sadd.s32 %s356, 1
    %s358 = scalar_select %p355, %s356, %s357
    %p361 = pneg %p355
    %p362 = scmp.eq.s32.totalorder %s20, 3
    %p363 = por %p361, %p362
    %p364 = scmp.ne.s32.totalorder %s356, %s359
    %p365 = scmp.eq.s32.totalorder %s20, 0
    %p366 = por %p364, %p365
    %p367 = scmp.ne.s32.totalorder %s356, %s359
    %p368 = scmp.eq.s32.totalorder %s25, 3
    %p369 = por %p367, %p368
    %p370 = scmp.ne.s32.totalorder %s359, %s360
    %p371 = scmp.eq.s32.totalorder %s25, 0
    %p372 = por %p370, %p371
    %p373 = scmp.ne.s32.totalorder %s359, %s360
    %p374 = scmp.eq.s32.totalorder %s26, 3
    %p375 = por %p373, %p374
    %p377 = scmp.ne.s32.totalorder %s360, %s376
    %p378 = scmp.eq.s32.totalorder %s26, 0
    %p379 = por %p377, %p378
    %s380 = ssub.s32 %s28, %s35
    %s381 = ssub.s32 %s27, %s39
    %s382 = sor.u32 %s380, %s381
    %p383 = scmp.eq.s32.totalorder %s382, 0
    %s385 = sadd.s32 %s384, 1
    %s386 = scalar_select %p383, %s384, %s385
    %p389 = pneg %p383
    %p390 = scmp.eq.s32.totalorder %s20, 3
    %p391 = por %p389, %p390
    %p392 = scmp.ne.s32.totalorder %s384, %s387
    %p393 = scmp.eq.s32.totalorder %s20, 0
    %p394 = por %p392, %p393
    %p395 = scmp.ne.s32.totalorder %s384, %s387
    %p396 = scmp.eq.s32.totalorder %s25, 3
    %p397 = por %p395, %p396
    %p398 = scmp.ne.s32.totalorder %s387, %s388
    %p399 = scmp.eq.s32.totalorder %s25, 0
    %p400 = por %p398, %p399
    %p401 = scmp.ne.s32.totalorder %s387, %s388
    %p402 = scmp.eq.s32.totalorder %s26, 3
    %p403 = por %p401, %p402
    %p405 = scmp.ne.s32.totalorder %s388, %s404
    %p406 = scmp.eq.s32.totalorder %s26, 0
    %p407 = por %p405, %p406
    %p408 = scmp.le.s32.totalorder 1, %s20
    %p409 = scmp.lt.s32.totalorder %s20, 5
    %p410 = pnand %p408, %p409
    %p411 = pneg %p410
    // Predicated region
    $region9: #{transformer_forward_pallas.1} parent=5 // pred_check
      _
    $region10: #{transformer_forward_pallas.1} parent=5 // pred_check_branch
      %413 = sbr.rel (%p410) target = $region12
    $region11: #{transformer_forward_pallas.1} parent=5 // pred_region
      %s414 = ssub.s32 %s20, 1
    $region12: #{transformer_forward_pallas.1} parent=5 // pred_fallthru
      _
    %p415 = scmp.lt.s32.totalorder %s20, 4
    // Predicated region
    $region13: #{transformer_forward_pallas.1} parent=5 // pred_check
      %p416 = pneg %p415
    $region14: #{transformer_forward_pallas.1} parent=5 // pred_check_branch
      %418 = sbr.rel (%p416) target = $region16
    $region15: #{transformer_forward_pallas.1} parent=5 // pred_region
      // Predicated region
      $region17: #{transformer_forward_pallas.1} parent=15 // pred_check
        %p419 = pneg %p52
      $region18: #{transformer_forward_pallas.1} parent=15 // pred_check_branch
        %421 = sbr.rel (%p419) target = $region20
      $region19: #{transformer_forward_pallas.1} parent=15 // pred_region
        %p422 = scmp.lt.s32.totalorder %s27, 1
        %s423 = scalar_select %p422, %s27, 1
        %s424 = smul.addr %s423, 8
        %s425 = scalar_lea.vmem %s0, %s424
      $region20: #{transformer_forward_pallas.1} parent=15 // pred_fallthru
        _
      // Predicated region
      $region21: #{transformer_forward_pallas.1} parent=15 // pred_check
        %p426 = pneg %p78
      $region22: #{transformer_forward_pallas.1} parent=15 // pred_check_branch
        %428 = sbr.rel (%p426) target = $region24
      $region23: #{transformer_forward_pallas.1} parent=15 // pred_region
        %p429 = scmp.lt.s32.totalorder %s28, 1
        %s430 = scalar_select %p429, %s28, 1
        %s431 = scalar_lea.vmem %s1, %s430
      $region24: #{transformer_forward_pallas.1} parent=15 // pred_fallthru
        _
      // Predicated region
      $region25: #{transformer_forward_pallas.1} parent=15 // pred_check
        %p432 = pneg %p104
      $region26: #{transformer_forward_pallas.1} parent=15 // pred_check_branch
        %434 = sbr.rel (%p432) target = $region28
      $region27: #{transformer_forward_pallas.1} parent=15 // pred_region
        %p435 = scmp.lt.s32.totalorder %s28, 1
        %s436 = scalar_select %p435, %s28, 1
        %s437 = scalar_lea.vmem %s2, %s436
      $region28: #{transformer_forward_pallas.1} parent=15 // pred_fallthru
        _
      // Predicated region
      $region29: #{transformer_forward_pallas.1} parent=15 // pred_check
        %p438 = pneg %p130
      $region30: #{transformer_forward_pallas.1} parent=15 // pred_check_branch
        %440 = sbr.rel (%p438) target = $region32
      $region31: #{transformer_forward_pallas.1} parent=15 // pred_region
        %p441 = scmp.lt.s32.totalorder %s28, 1
        %s442 = scalar_select %p441, %s28, 1
        %s443 = smul.addr %s442, 8
        %s444 = smul.addr %s443, 8
        %s445 = scalar_lea.vmem %s3, %s444
      $region32: #{transformer_forward_pallas.1} parent=15 // pred_fallthru
        _
      // Predicated region
      $region33: #{transformer_forward_pallas.1} parent=15 // pred_check
        %p446 = pneg %p156
      $region34: #{transformer_forward_pallas.1} parent=15 // pred_check_branch
        %448 = sbr.rel (%p446) target = $region36
      $region35: #{transformer_forward_pallas.1} parent=15 // pred_region
        %p449 = scmp.lt.s32.totalorder %s28, 1
        %s450 = scalar_select %p449, %s28, 1
        %s451 = smul.addr %s450, 8
        %s452 = smul.addr %s451, 8
        %s453 = scalar_lea.vmem %s4, %s452
      $region36: #{transformer_forward_pallas.1} parent=15 // pred_fallthru
        _
      // Predicated region
      $region37: #{transformer_forward_pallas.1} parent=15 // pred_check
        %p454 = pneg %p182
      $region38: #{transformer_forward_pallas.1} parent=15 // pred_check_branch
        %456 = sbr.rel (%p454) target = $region40
      $region39: #{transformer_forward_pallas.1} parent=15 // pred_region
        %p457 = scmp.lt.s32.totalorder %s28, 1
        %s458 = scalar_select %p457, %s28, 1
        %s459 = scalar_lea.vmem %s5, %s458
      $region40: #{transformer_forward_pallas.1} parent=15 // pred_fallthru
        _
      // Predicated region
      $region41: #{transformer_forward_pallas.1} parent=15 // pred_check
        %p460 = pneg %p208
      $region42: #{transformer_forward_pallas.1} parent=15 // pred_check_branch
        %462 = sbr.rel (%p460) target = $region44
      $region43: #{transformer_forward_pallas.1} parent=15 // pred_region
        %p463 = scmp.lt.s32.totalorder %s28, 1
        %s464 = scalar_select %p463, %s28, 1
        %s465 = scalar_lea.vmem %s6, %s464
      $region44: #{transformer_forward_pallas.1} parent=15 // pred_fallthru
        _
      // Predicated region
      $region45: #{transformer_forward_pallas.1} parent=15 // pred_check
        %p466 = pneg %p234
      $region46: #{transformer_forward_pallas.1} parent=15 // pred_check_branch
        %468 = sbr.rel (%p466) target = $region48
      $region47: #{transformer_forward_pallas.1} parent=15 // pred_region
        %p469 = scmp.lt.s32.totalorder %s28, 1
        %s470 = scalar_select %p469, %s28, 1
        %s471 = scalar_lea.vmem %s7, %s470
      $region48: #{transformer_forward_pallas.1} parent=15 // pred_fallthru
        _
      // Predicated region
      $region49: #{transformer_forward_pallas.1} parent=15 // pred_check
        %p472 = pneg %p260
      $region50: #{transformer_forward_pallas.1} parent=15 // pred_check_branch
        %474 = sbr.rel (%p472) target = $region52
      $region51: #{transformer_forward_pallas.1} parent=15 // pred_region
        %p475 = scmp.lt.s32.totalorder %s28, 1
        %s476 = scalar_select %p475, %s28, 1
        %s477 = smul.addr %s476, 4
        %s478 = smul.addr %s477, 8
        %s479 = scalar_lea.vmem %s8, %s478
      $region52: #{transformer_forward_pallas.1} parent=15 // pred_fallthru
        _
      // Predicated region
      $region53: #{transformer_forward_pallas.1} parent=15 // pred_check
        %p480 = pneg %p286
      $region54: #{transformer_forward_pallas.1} parent=15 // pred_check_branch
        %482 = sbr.rel (%p480) target = $region56
      $region55: #{transformer_forward_pallas.1} parent=15 // pred_region
        %p483 = scmp.lt.s32.totalorder %s28, 1
        %s484 = scalar_select %p483, %s28, 1
        %s485 = scalar_lea.vmem %s9, %s484
      $region56: #{transformer_forward_pallas.1} parent=15 // pred_fallthru
        _
      // Predicated region
      $region57: #{transformer_forward_pallas.1} parent=15 // pred_check
        %p486 = pneg %p312
      $region58: #{transformer_forward_pallas.1} parent=15 // pred_check_branch
        %488 = sbr.rel (%p486) target = $region60
      $region59: #{transformer_forward_pallas.1} parent=15 // pred_region
        %p489 = scmp.lt.s32.totalorder %s28, 1
        %s490 = scalar_select %p489, %s28, 1
        %s491 = smul.addr %s490, 8
        %s492 = smul.addr %s491, 8
        %s493 = scalar_lea.vmem %s10, %s492
      $region60: #{transformer_forward_pallas.1} parent=15 // pred_fallthru
        _
      // Predicated region
      $region61: #{transformer_forward_pallas.1} parent=15 // pred_check
        %p494 = pneg %p338
      $region62: #{transformer_forward_pallas.1} parent=15 // pred_check_branch
        %496 = sbr.rel (%p494) target = $region64
      $region63: #{transformer_forward_pallas.1} parent=15 // pred_region
        %p497 = scmp.lt.s32.totalorder %s28, 1
        %s498 = scalar_select %p497, %s28, 1
        %s499 = scalar_lea.vmem %s11, %s498
      $region64: #{transformer_forward_pallas.1} parent=15 // pred_fallthru
        _
    $region16: #{transformer_forward_pallas.1} parent=5 // pred_fallthru
      _
    %p500 = scmp.le.s32.totalorder 1, %s20
    %p501 = scmp.lt.s32.totalorder %s20, 5
    %p502 = pnand %p500, %p501
    %p503 = pneg %p502
    // Predicated region
    $region65: #{transformer_forward_pallas.1} parent=5 // pred_check
      _
    $region66: #{transformer_forward_pallas.1} parent=5 // pred_check_branch
      %505 = sbr.rel (%p502) target = $region68
    $region67: #{transformer_forward_pallas.1} parent=5 // pred_region
      %s506 = ssub.s32 %s20, 1
      %p507 = scmp.lt.s32.totalorder %s29, 1
      %s508 = scalar_select %p507, %s29, 1
      %s509 = smul.addr %s508, 8
      %s510 = scalar_lea.vmem %s0, %s509
      %p511 = pneg %p58
      %p512 = pneg %p55
      %p513 = scmp.lt.s32.totalorder %s30, 1
      %s514 = scalar_select %p513, %s30, 1
      %s515 = scalar_lea.vmem %s1, %s514
      %p516 = pneg %p84
      %p517 = pneg %p81
      %p518 = scmp.lt.s32.totalorder %s30, 1
      %s519 = scalar_select %p518, %s30, 1
      %s520 = scalar_lea.vmem %s2, %s519
      %p521 = pneg %p110
      %p522 = pneg %p107
      %p523 = scmp.lt.s32.totalorder %s30, 1
      %s524 = scalar_select %p523, %s30, 1
      %s525 = smul.addr %s524, 8
      %s526 = smul.addr %s525, 8
      %s527 = scalar_lea.vmem %s3, %s526
      %p528 = pneg %p136
      %p529 = pneg %p133
      %p530 = scmp.lt.s32.totalorder %s30, 1
      %s531 = scalar_select %p530, %s30, 1
      %s532 = smul.addr %s531, 8
      %s533 = smul.addr %s532, 8
      %s534 = scalar_lea.vmem %s4, %s533
      %p535 = pneg %p162
      %p536 = pneg %p159
      %p537 = scmp.lt.s32.totalorder %s30, 1
      %s538 = scalar_select %p537, %s30, 1
      %s539 = scalar_lea.vmem %s5, %s538
      %p540 = pneg %p188
      %p541 = pneg %p185
      %p542 = scmp.lt.s32.totalorder %s30, 1
      %s543 = scalar_select %p542, %s30, 1
      %s544 = scalar_lea.vmem %s6, %s543
      %p545 = pneg %p214
      %p546 = pneg %p211
      %p547 = scmp.lt.s32.totalorder %s30, 1
      %s548 = scalar_select %p547, %s30, 1
      %s549 = scalar_lea.vmem %s7, %s548
      %p550 = pneg %p240
      %p551 = pneg %p237
      %p552 = scmp.lt.s32.totalorder %s30, 1
      %s553 = scalar_select %p552, %s30, 1
      %s554 = smul.addr %s553, 4
      %s555 = smul.addr %s554, 8
      %s556 = scalar_lea.vmem %s8, %s555
      %p557 = pneg %p266
      %p558 = pneg %p263
      %p559 = scmp.lt.s32.totalorder %s30, 1
      %s560 = scalar_select %p559, %s30, 1
      %s561 = scalar_lea.vmem %s9, %s560
      %p562 = pneg %p292
      %p563 = pneg %p289
      %p564 = scmp.lt.s32.totalorder %s30, 1
      %s565 = scalar_select %p564, %s30, 1
      %s566 = smul.addr %s565, 8
      %s567 = smul.addr %s566, 8
      %s568 = scalar_lea.vmem %s10, %s567
      %p569 = pneg %p318
      %p570 = pneg %p315
      %p571 = scmp.lt.s32.totalorder %s30, 1
      %s572 = scalar_select %p571, %s30, 1
      %s573 = scalar_lea.vmem %s11, %s572
      %p574 = pneg %p344
      %p575 = pneg %p341
      %p576 = pneg %p372
      %p577 = pneg %p369
      %p578 = scmp.lt.s32.totalorder %s30, 1
      %s579 = scalar_select %p578, %s30, 1
      %p580 = scmp.lt.s32.totalorder %s29, 1
      %s581 = scalar_select %p580, %s29, 1
      %s582 = smul.addr %s579, 2
      %s583 = sadd.s32 %s581, %s582
      %s584 = smul.addr %s583, 8
      %s585 = scalar_lea.vmem %s12, %s584
      %p586 = pneg %p400
      %p587 = pneg %p397
      %p588 = scmp.lt.s32.totalorder %s30, 1
      %s589 = scalar_select %p588, %s30, 1
      %p590 = scmp.lt.s32.totalorder %s29, 1
      %s591 = scalar_select %p590, %s29, 1
      %s592 = smul.addr %s589, 2
      %s593 = sadd.s32 %s591, %s592
      %s594 = smul.addr %s593, 8
      %s595 = scalar_lea.vmem %s13, %s594
      %p596 = scmp.lt.s32.totalorder %s29, 1
      %s597 = scalar_select %p596, %s29, 1
      %s598 = smul.addr %s597, 8
      %s599 = scalar_lea.vmem %s0, %s598
      %p600 = scmp.lt.s32.totalorder %s30, 1
      %s601 = scalar_select %p600, %s30, 1
      %s602 = scalar_lea.vmem %s1, %s601
      %p603 = scmp.lt.s32.totalorder %s30, 1
      %s604 = scalar_select %p603, %s30, 1
      %s605 = scalar_lea.vmem %s2, %s604
      %p606 = scmp.lt.s32.totalorder %s30, 1
      %s607 = scalar_select %p606, %s30, 1
      %s608 = smul.addr %s607, 8
      %s609 = smul.addr %s608, 8
      %s610 = scalar_lea.vmem %s3, %s609
      %p611 = scmp.lt.s32.totalorder %s30, 1
      %s612 = scalar_select %p611, %s30, 1
      %s613 = smul.addr %s612, 8
      %s614 = smul.addr %s613, 8
      %s615 = scalar_lea.vmem %s4, %s614
      %p616 = scmp.lt.s32.totalorder %s30, 1
      %s617 = scalar_select %p616, %s30, 1
      %s618 = scalar_lea.vmem %s5, %s617
      %p619 = scmp.lt.s32.totalorder %s30, 1
      %s620 = scalar_select %p619, %s30, 1
      %s621 = scalar_lea.vmem %s6, %s620
      %p622 = scmp.lt.s32.totalorder %s30, 1
      %s623 = scalar_select %p622, %s30, 1
      %s624 = scalar_lea.vmem %s7, %s623
      %p625 = scmp.lt.s32.totalorder %s30, 1
      %s626 = scalar_select %p625, %s30, 1
      %s627 = smul.addr %s626, 4
      %s628 = smul.addr %s627, 8
      %s629 = scalar_lea.vmem %s8, %s628
      %p630 = scmp.lt.s32.totalorder %s30, 1
      %s631 = scalar_select %p630, %s30, 1
      %s632 = scalar_lea.vmem %s9, %s631
      %p633 = scmp.lt.s32.totalorder %s30, 1
      %s634 = scalar_select %p633, %s30, 1
      %s635 = smul.addr %s634, 8
      %s636 = smul.addr %s635, 8
      %s637 = scalar_lea.vmem %s10, %s636
      %p638 = scmp.lt.s32.totalorder %s30, 1
      %s639 = scalar_select %p638, %s30, 1
      %s640 = scalar_lea.vmem %s11, %s639
      %p641 = scmp.lt.s32.totalorder %s30, 1
      %s642 = scalar_select %p641, %s30, 1
      %p643 = scmp.lt.s32.totalorder %s29, 1
      %s644 = scalar_select %p643, %s29, 1
      %s645 = smul.addr %s642, 2
      %s646 = sadd.s32 %s644, %s645
      %s647 = smul.addr %s646, 8
      %s648 = scalar_lea.vmem %s12, %s647
      %p649 = scmp.lt.s32.totalorder %s30, 1
      %s650 = scalar_select %p649, %s30, 1
      %p651 = scmp.lt.s32.totalorder %s29, 1
      %s652 = scalar_select %p651, %s29, 1
      %s653 = smul.addr %s650, 2
      %s654 = sadd.s32 %s652, %s653
      %s655 = smul.addr %s654, 8
      %s656 = scalar_lea.vmem %s13, %s655
      %p657 = scmp.eq.s32.totalorder %s30, 0
      // Predicated region
      $region69: #{transformer_forward_pallas.1} parent=67 // pred_check
        %p658 = pneg %p657
      $region70: #{transformer_forward_pallas.1} parent=67 // pred_check_branch
        %660 = sbr.rel (%p658) target = $region72
      $region71: #{transformer_forward_pallas.1} parent=67 // pred_region
        %v661 = vld [vmem:[%s599] sm:$0xff]
        %vm662 = vcmask 261120
        %663 = vst.msk [vmem:[#allocation2] sm:$0xff] %vm662, %v661
      $region72: #{transformer_forward_pallas.1} parent=67 // pred_fallthru
        _
      %v664 = vld [vmem:[#allocation2] sm:$0xff]
      %v665 = vld [vmem:[%s602] sm:$0x1]
      %v666 = vld [vmem:[%s605] sm:$0x1]
      %vm667 = vcmask 261120
      %v668 = vsel %vm667, %v664, 0.0
      %669 = vadd.xlane.f32.xlu0 %v668
      %v670 = vpop.xlane.xlu0 %669
      %v671 = vrcp.pop 32.0
      %v672 = vmul.f32 %v670, %v671
      %v673 = vsub.f32 %v664, %v672
      %v674 = vmul.f32 %v673, %v673
      %v675 = vsel %vm667, %v674, 0.0
      %676 = vadd.xlane.f32.xlu0 %v675
      %v677 = vpop.xlane.xlu0 %676
      %v678 = vmul.f32 %v677, %v671
      %v679 = vadd.f32 %v678, 1e-05
      %v680 = vrsqrt.pop %v679
      %v681 = vmul.f32 %v673, %v680
      %v683 = vlaneseq
      %v684 = vshrl.u32 %v683, 7
      %v685 = vsub.s32 0, %v684
      %v686 = vrot.slane %v665, %v685
      %v688 = vmul.f32 %v681, %v686
      %v690 = vlaneseq
      %v691 = vshrl.u32 %v690, 7
      %v692 = vsub.s32 0, %v691
      %v693 = vrot.slane %v666, %v692
      %v695 = vadd.f32 %v688, %v693
      %v696 = vld [vmem:[%s610] sm:$0xff]
      %v697 = vld [vmem:[%s610 + $0x8] sm:$0xff]
      %v698 = vld [vmem:[%s610 + $0x10] sm:$0xff]
      %v699 = vld [vmem:[%s610 + $0x18] sm:$0xff]
      %v700 = vld [vmem:[%s610 + $0x20] sm:$0xff]
      %v701 = vld [vmem:[%s610 + $0x28] sm:$0xff]
      %v702 = vld [vmem:[%s610 + $0x30] sm:$0xff]
      %v703 = vld [vmem:[%s610 + $0x38] sm:$0xff]
      %v705 = vsel %vm667, %v695, 0
      %707 = vmatprep.subr.mxu0 %v697
      %708 = vmatpush1.msra.mxu0 %v696
      %709 = vmatprep.subr.mxu0 %v699
      %710 = vmatpush1.msra.mxu0 %v698
      %711 = vmatprep.subr.mxu0 %v701
      %712 = vmatpush1.msra.mxu0 %v700
      %713 = vmatprep.subr.mxu0 %v703
      %714 = vmatpush1.msra.mxu0 %v702
      %715 = vmatprep.subr.mxu0 0.0
      %716 = vmatpush1.msra.mxu0 0.0
      %717 = vmatprep.subr.mxu0 0.0
      %718 = vmatpush1.msra.mxu0 0.0
      %719 = vmatprep.subr.mxu0 0.0
      %720 = vmatpush1.msra.mxu0 0.0
      %721 = vmatprep.subr.mxu0 0.0
      %722 = vmatpush1.msra.mxu0 0.0
      %723 = vmatprep.subr.mxu0 0.0
      %724 = vmatpush1.msra.mxu0 0.0
      %725 = vmatprep.subr.mxu0 0.0
      %726 = vmatpush1.msra.mxu0 0.0
      %727 = vmatprep.subr.mxu0 0.0
      %728 = vmatpush1.msra.mxu0 0.0
      %729 = vmatprep.subr.mxu0 0.0
      %730 = vmatpush1.msra.mxu0 0.0
      %731 = vmatprep.subr.mxu0 0.0
      %732 = vmatpush1.msra.mxu0 0.0
      %733 = vmatprep.subr.mxu0 0.0
      %734 = vmatpush1.msra.mxu0 0.0
      %735 = vmatprep.subr.mxu0 0.0
      %736 = vmatpush1.msra.mxu0 0.0
      %737 = vmatprep.subr.mxu0 0.0
      %738 = vmatpush1.msra.mxu0 0.0
      %739 = vmatprep.subr.mxu0 0.0
      %740 = vmatpush1.msra.mxu0 0.0
      %741 = vmatprep.subr.mxu0 0.0
      %742 = vmatpush1.msra.mxu0 0.0
      %743 = vmatprep.subr.mxu0 0.0
      %744 = vmatpush1.msra.mxu0 0.0
      %745 = vmatprep.subr.mxu0 0.0
      %746 = vmatpush1.msra.mxu0 0.0
      %747 = vmatprep.subr.mxu0 0.0
      %748 = vmatpush1.msra.mxu0 0.0
      %749 = vmatprep.subr.mxu0 0.0
      %750 = vmatpush1.msra.mxu0 0.0
      %751 = vmatprep.subr.mxu0 0.0
      %752 = vmatpush1.msra.mxu0 0.0
      %753 = vmatprep.subr.mxu0 0.0
      %754 = vmatpush1.msra.mxu0 0.0
      %755 = vmatprep.subr.mxu0 0.0
      %756 = vmatpush1.msra.mxu0 0.0
      %757 = vmatprep.subr.mxu0 0.0
      %758 = vmatpush1.msra.mxu0 0.0
      %759 = vmatprep.subr.mxu0 0.0
      %760 = vmatpush1.msra.mxu0 0.0
      %761 = vmatprep.subr.mxu0 0.0
      %762 = vmatpush1.msra.mxu0 0.0
      %763 = vmatprep.subr.mxu0 0.0
      %764 = vmatpush1.msra.mxu0 0.0
      %765 = vmatprep.subr.mxu0 0.0
      %766 = vmatpush1.msra.mxu0 0.0
      %767 = vmatprep.subr.mxu0 0.0
      %768 = vmatpush1.msra.mxu0 0.0
      %769 = vmatprep.subr.mxu0 0.0
      %770 = vmatpush1.msra.mxu0 0.0
      %771 = vmatprep.mubr.f32.mxu0 0.0
      %772 = vmatmul.mubr.f32.gmra.mrb[0].mxu0 %v705
      %v773 = vpop.f32.mrb[0].mxu0
      %v774 = vadd.f32 0.0, %v773
      %v775 = vpop.f32.mrb[0].mxu0
      %v776 = vadd.f32 0.0, %v775
      %777 = vdwg.mxu0
      %vm778 = vcmask 130048
      %779 = vst.msk [vmem:[#allocation3] sm:$0xff] %vm778, %v774
      %781 = vrot.lane.b32.xlu0 %v774, 112
      %v782 = vpop.permute.xlu0 %781
      %s784 = scalar_lea.vmem [#allocation3], 8
      %785 = vst.msk [vmem:[%s784] sm:$0xff] %vm778, %v782
      %786 = vrot.lane.b32.xlu0 %v774, 96
      %v787 = vpop.permute.xlu0 %786
      %s789 = scalar_lea.vmem [#allocation3], 16
      %790 = vst.msk [vmem:[%s789] sm:$0xff] %vm778, %v787
      %791 = vrot.lane.b32.xlu0 %v774, 80
      %v792 = vpop.permute.xlu0 %791
      %s794 = scalar_lea.vmem [#allocation3], 24
      %795 = vst.msk [vmem:[%s794] sm:$0xff] %vm778, %v792
      %796 = vrot.lane.b32.xlu0 %v774, 64
      %v797 = vpop.permute.xlu0 %796
      %s799 = scalar_lea.vmem [#allocation3], 32
      %800 = vst.msk [vmem:[%s799] sm:$0xff] %vm778, %v797
      %801 = vrot.lane.b32.xlu0 %v774, 48
      %v802 = vpop.permute.xlu0 %801
      %s804 = scalar_lea.vmem [#allocation3], 40
      %805 = vst.msk [vmem:[%s804] sm:$0xff] %vm778, %v802
      %806 = vrot.lane.b32.xlu0 %v774, 32
      %v807 = vpop.permute.xlu0 %806
      %s809 = scalar_lea.vmem [#allocation3], 48
      %810 = vst.msk [vmem:[%s809] sm:$0xff] %vm778, %v807
      %811 = vrot.lane.b32.xlu0 %v774, 16
      %v812 = vpop.permute.xlu0 %811
      %s814 = scalar_lea.vmem [#allocation3], 56
      %815 = vst.msk [vmem:[%s814] sm:$0xff] %vm778, %v812
      %s816 = scalar_lea.vmem [#allocation3], 64
      %817 = vst.msk [vmem:[%s816] sm:$0xff] %vm778, %v776
      %819 = vrot.lane.b32.xlu0 %v776, 112
      %v820 = vpop.permute.xlu0 %819
      %s822 = scalar_lea.vmem [#allocation3], 72
      %823 = vst.msk [vmem:[%s822] sm:$0xff] %vm778, %v820
      %824 = vrot.lane.b32.xlu0 %v776, 96
      %v825 = vpop.permute.xlu0 %824
      %s827 = scalar_lea.vmem [#allocation3], 80
      %828 = vst.msk [vmem:[%s827] sm:$0xff] %vm778, %v825
      %829 = vrot.lane.b32.xlu0 %v776, 80
      %v830 = vpop.permute.xlu0 %829
      %s832 = scalar_lea.vmem [#allocation3], 88
      %833 = vst.msk [vmem:[%s832] sm:$0xff] %vm778, %v830
      %v834 = vld [vmem:[#allocation3] sm:$0xff]
      %v835 = vld [vmem:[#allocation3 + $0x8] sm:$0xff]
      %v836 = vld [vmem:[#allocation3 + $0x10] sm:$0xff]
      %v837 = vld [vmem:[#allocation3 + $0x18] sm:$0xff]
      %v838 = vld [vmem:[%s799] sm:$0xff]
      %v839 = vld [vmem:[%s799 + $0x8] sm:$0xff]
      %v840 = vld [vmem:[%s799 + $0x10] sm:$0xff]
      %v841 = vld [vmem:[%s799 + $0x18] sm:$0xff]
      %v842 = vld [vmem:[%s816] sm:$0xff]
      %v843 = vld [vmem:[%s816 + $0x8] sm:$0xff]
      %v844 = vld [vmem:[%s816 + $0x10] sm:$0xff]
      %v845 = vld [vmem:[%s816 + $0x18] sm:$0xff]
      %v847 = vsel %vm778, %v834, 0
      %v850 = vsel %vm778, %v838, 0
      %852 = vmatprep.subr.mxu0 0.0
      %853 = vmatpush1.xpose.msra.mxu0 %v850
      %854 = vmatprep.subr.mxu0 0.0
      %855 = vmatpush1.xpose.msra.mxu0 0.0
      %856 = vmatprep.subr.mxu0 0.0
      %857 = vmatpush1.xpose.msra.mxu0 0.0
      %858 = vmatprep.subr.mxu0 0.0
      %859 = vmatpush1.xpose.msra.mxu0 0.0
      %860 = vmatprep.subr.mxu0 0.0
      %861 = vmatpush1.xpose.msra.mxu0 0.0
      %862 = vmatprep.subr.mxu0 0.0
      %863 = vmatpush1.xpose.msra.mxu0 0.0
      %864 = vmatprep.subr.mxu0 0.0
      %865 = vmatpush1.xpose.msra.mxu0 0.0
      %866 = vmatprep.subr.mxu0 0.0
      %867 = vmatpush1.xpose.msra.mxu0 0.0
      %868 = vmatprep.subr.mxu0 0.0
      %869 = vmatpush1.xpose.msra.mxu0 0.0
      %870 = vmatprep.subr.mxu0 0.0
      %871 = vmatpush1.xpose.msra.mxu0 0.0
      %872 = vmatprep.subr.mxu0 0.0
      %873 = vmatpush1.xpose.msra.mxu0 0.0
      %874 = vmatprep.subr.mxu0 0.0
      %875 = vmatpush1.xpose.msra.mxu0 0.0
      %876 = vmatprep.subr.mxu0 0.0
      %877 = vmatpush1.xpose.msra.mxu0 0.0
      %878 = vmatprep.subr.mxu0 0.0
      %879 = vmatpush1.xpose.msra.mxu0 0.0
      %880 = vmatprep.subr.mxu0 0.0
      %881 = vmatpush1.xpose.msra.mxu0 0.0
      %882 = vmatprep.subr.mxu0 0.0
      %883 = vmatpush1.xpose.msra.mxu0 0.0
      %884 = vmatprep.subr.mxu0 0.0
      %885 = vmatpush1.xpose.msra.mxu0 0.0
      %886 = vmatprep.subr.mxu0 0.0
      %887 = vmatpush1.xpose.msra.mxu0 0.0
      %888 = vmatprep.subr.mxu0 0.0
      %889 = vmatpush1.xpose.msra.mxu0 0.0
      %890 = vmatprep.subr.mxu0 0.0
      %891 = vmatpush1.xpose.msra.mxu0 0.0
      %892 = vmatprep.subr.mxu0 0.0
      %893 = vmatpush1.xpose.msra.mxu0 0.0
      %894 = vmatprep.subr.mxu0 0.0
      %895 = vmatpush1.xpose.msra.mxu0 0.0
      %896 = vmatprep.subr.mxu0 0.0
      %897 = vmatpush1.xpose.msra.mxu0 0.0
      %898 = vmatprep.subr.mxu0 0.0
      %899 = vmatpush1.xpose.msra.mxu0 0.0
      %900 = vmatprep.subr.mxu0 0.0
      %901 = vmatpush1.xpose.msra.mxu0 0.0
      %902 = vmatprep.subr.mxu0 0.0
      %903 = vmatpush1.xpose.msra.mxu0 0.0
      %904 = vmatprep.subr.mxu0 0.0
      %905 = vmatpush1.xpose.msra.mxu0 0.0
      %906 = vmatprep.subr.mxu0 0.0
      %907 = vmatpush1.xpose.msra.mxu0 0.0
      %908 = vmatprep.subr.mxu0 0.0
      %909 = vmatpush1.xpose.msra.mxu0 0.0
      %910 = vmatprep.subr.mxu0 0.0
      %911 = vmatpush1.xpose.msra.mxu0 0.0
      %912 = vmatprep.subr.mxu0 0.0
      %913 = vmatpush1.xpose.msra.mxu0 0.0
      %914 = vmatprep.subr.mxu0 0.0
      %915 = vmatpush1.xpose.msra.mxu0 0.0
      %916 = vmatprep.mubr.f32.mxu0 0.0
      %917 = vmatmul.mubr.f32.gmra.mrb[0].mxu0 %v847
      %v918 = vpop.f32.mrb[0].mxu0
      %v919 = vadd.f32 0.0, %v918
      %v920 = vpop.f32.mrb[0].mxu0
      %921 = vdwg.mxu0
      %v923 = vsel %vm778, %v835, 0
      %v926 = vsel %vm778, %v839, 0
      %928 = vmatprep.subr.mxu0 0.0
      %929 = vmatpush1.xpose.msra.mxu0 %v926
      %930 = vmatprep.subr.mxu0 0.0
      %931 = vmatpush1.xpose.msra.mxu0 0.0
      %932 = vmatprep.subr.mxu0 0.0
      %933 = vmatpush1.xpose.msra.mxu0 0.0
      %934 = vmatprep.subr.mxu0 0.0
      %935 = vmatpush1.xpose.msra.mxu0 0.0
      %936 = vmatprep.subr.mxu0 0.0
      %937 = vmatpush1.xpose.msra.mxu0 0.0
      %938 = vmatprep.subr.mxu0 0.0
      %939 = vmatpush1.xpose.msra.mxu0 0.0
      %940 = vmatprep.subr.mxu0 0.0
      %941 = vmatpush1.xpose.msra.mxu0 0.0
      %942 = vmatprep.subr.mxu0 0.0
      %943 = vmatpush1.xpose.msra.mxu0 0.0
      %944 = vmatprep.subr.mxu0 0.0
      %945 = vmatpush1.xpose.msra.mxu0 0.0
      %946 = vmatprep.subr.mxu0 0.0
      %947 = vmatpush1.xpose.msra.mxu0 0.0
      %948 = vmatprep.subr.mxu0 0.0
      %949 = vmatpush1.xpose.msra.mxu0 0.0
      %950 = vmatprep.subr.mxu0 0.0
      %951 = vmatpush1.xpose.msra.mxu0 0.0
      %952 = vmatprep.subr.mxu0 0.0
      %953 = vmatpush1.xpose.msra.mxu0 0.0
      %954 = vmatprep.subr.mxu0 0.0
      %955 = vmatpush1.xpose.msra.mxu0 0.0
      %956 = vmatprep.subr.mxu0 0.0
      %957 = vmatpush1.xpose.msra.mxu0 0.0
      %958 = vmatprep.subr.mxu0 0.0
      %959 = vmatpush1.xpose.msra.mxu0 0.0
      %960 = vmatprep.subr.mxu0 0.0
      %961 = vmatpush1.xpose.msra.mxu0 0.0
      %962 = vmatprep.subr.mxu0 0.0
      %963 = vmatpush1.xpose.msra.mxu0 0.0
      %964 = vmatprep.subr.mxu0 0.0
      %965 = vmatpush1.xpose.msra.mxu0 0.0
      %966 = vmatprep.subr.mxu0 0.0
      %967 = vmatpush1.xpose.msra.mxu0 0.0
      %968 = vmatprep.subr.mxu0 0.0
      %969 = vmatpush1.xpose.msra.mxu0 0.0
      %970 = vmatprep.subr.mxu0 0.0
      %971 = vmatpush1.xpose.msra.mxu0 0.0
      %972 = vmatprep.subr.mxu0 0.0
      %973 = vmatpush1.xpose.msra.mxu0 0.0
      %974 = vmatprep.subr.mxu0 0.0
      %975 = vmatpush1.xpose.msra.mxu0 0.0
      %976 = vmatprep.subr.mxu0 0.0
      %977 = vmatpush1.xpose.msra.mxu0 0.0
      %978 = vmatprep.subr.mxu0 0.0
      %979 = vmatpush1.xpose.msra.mxu0 0.0
      %980 = vmatprep.subr.mxu0 0.0
      %981 = vmatpush1.xpose.msra.mxu0 0.0
      %982 = vmatprep.subr.mxu0 0.0
      %983 = vmatpush1.xpose.msra.mxu0 0.0
      %984 = vmatprep.subr.mxu0 0.0
      %985 = vmatpush1.xpose.msra.mxu0 0.0
      %986 = vmatprep.subr.mxu0 0.0
      %987 = vmatpush1.xpose.msra.mxu0 0.0
      %988 = vmatprep.subr.mxu0 0.0
      %989 = vmatpush1.xpose.msra.mxu0 0.0
      %990 = vmatprep.subr.mxu0 0.0
      %991 = vmatpush1.xpose.msra.mxu0 0.0
      %992 = vmatprep.mubr.f32.mxu0 0.0
      %993 = vmatmul.mubr.f32.gmra.mrb[0].mxu0 %v923
      %v994 = vpop.f32.mrb[0].mxu0
      %v995 = vadd.f32 0.0, %v994
      %v996 = vpop.f32.mrb[0].mxu0
      %997 = vdwg.mxu0
      %v999 = vsel %vm778, %v836, 0
      %v1002 = vsel %vm778, %v840, 0
      %1004 = vmatprep.subr.mxu0 0.0
      %1005 = vmatpush1.xpose.msra.mxu0 %v1002
      %1006 = vmatprep.subr.mxu0 0.0
      %1007 = vmatpush1.xpose.msra.mxu0 0.0
      %1008 = vmatprep.subr.mxu0 0.0
      %1009 = vmatpush1.xpose.msra.mxu0 0.0
      %1010 = vmatprep.subr.mxu0 0.0
      %1011 = vmatpush1.xpose.msra.mxu0 0.0
      %1012 = vmatprep.subr.mxu0 0.0
      %1013 = vmatpush1.xpose.msra.mxu0 0.0
      %1014 = vmatprep.subr.mxu0 0.0
      %1015 = vmatpush1.xpose.msra.mxu0 0.0
      %1016 = vmatprep.subr.mxu0 0.0
      %1017 = vmatpush1.xpose.msra.mxu0 0.0
      %1018 = vmatprep.subr.mxu0 0.0
      %1019 = vmatpush1.xpose.msra.mxu0 0.0
      %1020 = vmatprep.subr.mxu0 0.0
      %1021 = vmatpush1.xpose.msra.mxu0 0.0
      %1022 = vmatprep.subr.mxu0 0.0
      %1023 = vmatpush1.xpose.msra.mxu0 0.0
      %1024 = vmatprep.subr.mxu0 0.0
      %1025 = vmatpush1.xpose.msra.mxu0 0.0
      %1026 = vmatprep.subr.mxu0 0.0
      %1027 = vmatpush1.xpose.msra.mxu0 0.0
      %1028 = vmatprep.subr.mxu0 0.0
      %1029 = vmatpush1.xpose.msra.mxu0 0.0
      %1030 = vmatprep.subr.mxu0 0.0
      %1031 = vmatpush1.xpose.msra.mxu0 0.0
      %1032 = vmatprep.subr.mxu0 0.0
      %1033 = vmatpush1.xpose.msra.mxu0 0.0
      %1034 = vmatprep.subr.mxu0 0.0
      %1035 = vmatpush1.xpose.msra.mxu0 0.0
      %1036 = vmatprep.subr.mxu0 0.0
      %1037 = vmatpush1.xpose.msra.mxu0 0.0
      %1038 = vmatprep.subr.mxu0 0.0
      %1039 = vmatpush1.xpose.msra.mxu0 0.0
      %1040 = vmatprep.subr.mxu0 0.0
      %1041 = vmatpush1.xpose.msra.mxu0 0.0
      %1042 = vmatprep.subr.mxu0 0.0
      %1043 = vmatpush1.xpose.msra.mxu0 0.0
      %1044 = vmatprep.subr.mxu0 0.0
      %1045 = vmatpush1.xpose.msra.mxu0 0.0
      %1046 = vmatprep.subr.mxu0 0.0
      %1047 = vmatpush1.xpose.msra.mxu0 0.0
      %1048 = vmatprep.subr.mxu0 0.0
      %1049 = vmatpush1.xpose.msra.mxu0 0.0
      %1050 = vmatprep.subr.mxu0 0.0
      %1051 = vmatpush1.xpose.msra.mxu0 0.0
      %1052 = vmatprep.subr.mxu0 0.0
      %1053 = vmatpush1.xpose.msra.mxu0 0.0
      %1054 = vmatprep.subr.mxu0 0.0
      %1055 = vmatpush1.xpose.msra.mxu0 0.0
      %1056 = vmatprep.subr.mxu0 0.0
      %1057 = vmatpush1.xpose.msra.mxu0 0.0
      %1058 = vmatprep.subr.mxu0 0.0
      %1059 = vmatpush1.xpose.msra.mxu0 0.0
      %1060 = vmatprep.subr.mxu0 0.0
      %1061 = vmatpush1.xpose.msra.mxu0 0.0
      %1062 = vmatprep.subr.mxu0 0.0
      %1063 = vmatpush1.xpose.msra.mxu0 0.0
      %1064 = vmatprep.subr.mxu0 0.0
      %1065 = vmatpush1.xpose.msra.mxu0 0.0
      %1066 = vmatprep.subr.mxu0 0.0
      %1067 = vmatpush1.xpose.msra.mxu0 0.0
      %1068 = vmatprep.mubr.f32.mxu0 0.0
      %1069 = vmatmul.mubr.f32.gmra.mrb[0].mxu0 %v999
      %v1070 = vpop.f32.mrb[0].mxu0
      %v1071 = vadd.f32 0.0, %v1070
      %v1072 = vpop.f32.mrb[0].mxu0
      %1073 = vdwg.mxu0
      %v1075 = vsel %vm778, %v837, 0
      %v1078 = vsel %vm778, %v841, 0
      %1080 = vmatprep.subr.mxu0 0.0
      %1081 = vmatpush1.xpose.msra.mxu0 %v1078
      %1082 = vmatprep.subr.mxu0 0.0
      %1083 = vmatpush1.xpose.msra.mxu0 0.0
      %1084 = vmatprep.subr.mxu0 0.0
      %1085 = vmatpush1.xpose.msra.mxu0 0.0
      %1086 = vmatprep.subr.mxu0 0.0
      %1087 = vmatpush1.xpose.msra.mxu0 0.0
      %1088 = vmatprep.subr.mxu0 0.0
      %1089 = vmatpush1.xpose.msra.mxu0 0.0
      %1090 = vmatprep.subr.mxu0 0.0
      %1091 = vmatpush1.xpose.msra.mxu0 0.0
      %1092 = vmatprep.subr.mxu0 0.0
      %1093 = vmatpush1.xpose.msra.mxu0 0.0
      %1094 = vmatprep.subr.mxu0 0.0
      %1095 = vmatpush1.xpose.msra.mxu0 0.0
      %1096 = vmatprep.subr.mxu0 0.0
      %1097 = vmatpush1.xpose.msra.mxu0 0.0
      %1098 = vmatprep.subr.mxu0 0.0
      %1099 = vmatpush1.xpose.msra.mxu0 0.0
      %1100 = vmatprep.subr.mxu0 0.0
      %1101 = vmatpush1.xpose.msra.mxu0 0.0
      %1102 = vmatprep.subr.mxu0 0.0
      %1103 = vmatpush1.xpose.msra.mxu0 0.0
      %1104 = vmatprep.subr.mxu0 0.0
      %1105 = vmatpush1.xpose.msra.mxu0 0.0
      %1106 = vmatprep.subr.mxu0 0.0
      %1107 = vmatpush1.xpose.msra.mxu0 0.0
      %1108 = vmatprep.subr.mxu0 0.0
      %1109 = vmatpush1.xpose.msra.mxu0 0.0
      %1110 = vmatprep.subr.mxu0 0.0
      %1111 = vmatpush1.xpose.msra.mxu0 0.0
      %1112 = vmatprep.subr.mxu0 0.0
      %1113 = vmatpush1.xpose.msra.mxu0 0.0
      %1114 = vmatprep.subr.mxu0 0.0
      %1115 = vmatpush1.xpose.msra.mxu0 0.0
      %1116 = vmatprep.subr.mxu0 0.0
      %1117 = vmatpush1.xpose.msra.mxu0 0.0
      %1118 = vmatprep.subr.mxu0 0.0
      %1119 = vmatpush1.xpose.msra.mxu0 0.0
      %1120 = vmatprep.subr.mxu0 0.0
      %1121 = vmatpush1.xpose.msra.mxu0 0.0
      %1122 = vmatprep.subr.mxu0 0.0
      %1123 = vmatpush1.xpose.msra.mxu0 0.0
      %1124 = vmatprep.subr.mxu0 0.0
      %1125 = vmatpush1.xpose.msra.mxu0 0.0
      %1126 = vmatprep.subr.mxu0 0.0
      %1127 = vmatpush1.xpose.msra.mxu0 0.0
      %1128 = vmatprep.subr.mxu0 0.0
      %1129 = vmatpush1.xpose.msra.mxu0 0.0
      %1130 = vmatprep.subr.mxu0 0.0
      %1131 = vmatpush1.xpose.msra.mxu0 0.0
      %1132 = vmatprep.subr.mxu0 0.0
      %1133 = vmatpush1.xpose.msra.mxu0 0.0
      %1134 = vmatprep.subr.mxu0 0.0
      %1135 = vmatpush1.xpose.msra.mxu0 0.0
      %1136 = vmatprep.subr.mxu0 0.0
      %1137 = vmatpush1.xpose.msra.mxu0 0.0
      %1138 = vmatprep.subr.mxu0 0.0
      %1139 = vmatpush1.xpose.msra.mxu0 0.0
      %1140 = vmatprep.subr.mxu0 0.0
      %1141 = vmatpush1.xpose.msra.mxu0 0.0
      %1142 = vmatprep.subr.mxu0 0.0
      %1143 = vmatpush1.xpose.msra.mxu0 0.0
      %1144 = vmatprep.mubr.f32.mxu0 0.0
      %1145 = vmatmul.mubr.f32.gmra.mrb[0].mxu0 %v1075
      %v1146 = vpop.f32.mrb[0].mxu0
      %v1147 = vadd.f32 0.0, %v1146
      %v1148 = vpop.f32.mrb[0].mxu0
      %1149 = vdwg.mxu0
      %vm1150 = vcmask 64512
      %v1151 = vsel %vm1150, %v919, -inf
      %1152 = vmax.xlane.f32.xlu0 %v1151
      %v1153 = vpop.xlane.xlu0 %1152
      %v1154 = vsel %vm1150, %v995, -inf
      %1155 = vmax.xlane.f32.xlu0 %v1154
      %v1156 = vpop.xlane.xlu0 %1155
      %v1157 = vsel %vm1150, %v1071, -inf
      %1158 = vmax.xlane.f32.xlu0 %v1157
      %v1159 = vpop.xlane.xlu0 %1158
      %v1160 = vsel %vm1150, %v1147, -inf
      %1161 = vmax.xlane.f32.xlu0 %v1160
      %v1162 = vpop.xlane.xlu0 %1161
      %v1163 = vsub.f32 %v919, %v1153
      %v1164 = vsub.f32 %v995, %v1156
      %v1165 = vsub.f32 %v1071, %v1159
      %v1166 = vsub.f32 %v1147, %v1162
      %v1167 = vmul.f32 %v1163, 1.442695
      %v1168 = vpow.pop %v1167
      %v1169 = vmul.f32 %v1164, 1.442695
      %v1170 = vpow.pop %v1169
      %v1171 = vmul.f32 %v1165, 1.442695
      %v1172 = vpow.pop %v1171
      %v1173 = vmul.f32 %v1166, 1.442695
      %v1174 = vpow.pop %v1173
      %v1175 = vsel %vm1150, %v1168, 0.0
      %1176 = vadd.xlane.f32.xlu0 %v1175
      %v1177 = vpop.xlane.xlu0 %1176
      %v1178 = vsel %vm1150, %v1170, 0.0
      %1179 = vadd.xlane.f32.xlu0 %v1178
      %v1180 = vpop.xlane.xlu0 %1179
      %v1181 = vsel %vm1150, %v1172, 0.0
      %1182 = vadd.xlane.f32.xlu0 %v1181
      %v1183 = vpop.xlane.xlu0 %1182
      %v1184 = vsel %vm1150, %v1174, 0.0
      %1185 = vadd.xlane.f32.xlu0 %v1184
      %v1186 = vpop.xlane.xlu0 %1185
      %v1187 = vrcp.pop %v1177
      %v1188 = vrcp.pop %v1180
      %v1189 = vrcp.pop %v1183
      %v1190 = vrcp.pop %v1186
      %v1191 = vmul.f32 %v1168, %v1187
      %v1192 = vmul.f32 %v1170, %v1188
      %v1193 = vmul.f32 %v1172, %v1189
      %v1194 = vmul.f32 %v1174, %v1190
      %v1196 = vsel %vm1150, %v1191, 0
      %1198 = vmatprep.subr.mxu0 0.0
      %1199 = vmatpush1.msra.mxu0 %v842
      %1200 = vmatprep.subr.mxu0 0.0
      %1201 = vmatpush1.msra.mxu0 0.0
      %1202 = vmatprep.subr.mxu0 0.0
      %1203 = vmatpush1.msra.mxu0 0.0
      %1204 = vmatprep.subr.mxu0 0.0
      %1205 = vmatpush1.msra.mxu0 0.0
      %1206 = vmatprep.subr.mxu0 0.0
      %1207 = vmatpush1.msra.mxu0 0.0
      %1208 = vmatprep.subr.mxu0 0.0
      %1209 = vmatpush1.msra.mxu0 0.0
      %1210 = vmatprep.subr.mxu0 0.0
      %1211 = vmatpush1.msra.mxu0 0.0
      %1212 = vmatprep.subr.mxu0 0.0
      %1213 = vmatpush1.msra.mxu0 0.0
      %1214 = vmatprep.subr.mxu0 0.0
      %1215 = vmatpush1.msra.mxu0 0.0
      %1216 = vmatprep.subr.mxu0 0.0
      %1217 = vmatpush1.msra.mxu0 0.0
      %1218 = vmatprep.subr.mxu0 0.0
      %1219 = vmatpush1.msra.mxu0 0.0
      %1220 = vmatprep.subr.mxu0 0.0
      %1221 = vmatpush1.msra.mxu0 0.0
      %1222 = vmatprep.subr.mxu0 0.0
      %1223 = vmatpush1.msra.mxu0 0.0
      %1224 = vmatprep.subr.mxu0 0.0
      %1225 = vmatpush1.msra.mxu0 0.0
      %1226 = vmatprep.subr.mxu0 0.0
      %1227 = vmatpush1.msra.mxu0 0.0
      %1228 = vmatprep.subr.mxu0 0.0
      %1229 = vmatpush1.msra.mxu0 0.0
      %1230 = vmatprep.subr.mxu0 0.0
      %1231 = vmatpush1.msra.mxu0 0.0
      %1232 = vmatprep.subr.mxu0 0.0
      %1233 = vmatpush1.msra.mxu0 0.0
      %1234 = vmatprep.subr.mxu0 0.0
      %1235 = vmatpush1.msra.mxu0 0.0
      %1236 = vmatprep.subr.mxu0 0.0
      %1237 = vmatpush1.msra.mxu0 0.0
      %1238 = vmatprep.subr.mxu0 0.0
      %1239 = vmatpush1.msra.mxu0 0.0
      %1240 = vmatprep.subr.mxu0 0.0
      %1241 = vmatpush1.msra.mxu0 0.0
      %1242 = vmatprep.subr.mxu0 0.0
      %1243 = vmatpush1.msra.mxu0 0.0
      %1244 = vmatprep.subr.mxu0 0.0
      %1245 = vmatpush1.msra.mxu0 0.0
      %1246 = vmatprep.subr.mxu0 0.0
      %1247 = vmatpush1.msra.mxu0 0.0
      %1248 = vmatprep.subr.mxu0 0.0
      %1249 = vmatpush1.msra.mxu0 0.0
      %1250 = vmatprep.subr.mxu0 0.0
      %1251 = vmatpush1.msra.mxu0 0.0
      %1252 = vmatprep.subr.mxu0 0.0
      %1253 = vmatpush1.msra.mxu0 0.0
      %1254 = vmatprep.subr.mxu0 0.0
      %1255 = vmatpush1.msra.mxu0 0.0
      %1256 = vmatprep.subr.mxu0 0.0
      %1257 = vmatpush1.msra.mxu0 0.0
      %1258 = vmatprep.subr.mxu0 0.0
      %1259 = vmatpush1.msra.mxu0 0.0
      %1260 = vmatprep.subr.mxu0 0.0
      %1261 = vmatpush1.msra.mxu0 0.0
      %1262 = vmatprep.mubr.f32.mxu0 0.0
      %1263 = vmatmul.mubr.f32.gmra.mrb[0].mxu0 %v1196
      %v1264 = vpop.f32.mrb[0].mxu0
      %v1265 = vadd.f32 0.0, %v1264
      %v1266 = vpop.f32.mrb[0].mxu0
      %1267 = vdwg.mxu0
      %v1269 = vsel %vm1150, %v1192, 0
      %1271 = vmatprep.subr.mxu0 0.0
      %1272 = vmatpush1.msra.mxu0 %v843
      %1273 = vmatprep.subr.mxu0 0.0
      %1274 = vmatpush1.msra.mxu0 0.0
      %1275 = vmatprep.subr.mxu0 0.0
      %1276 = vmatpush1.msra.mxu0 0.0
      %1277 = vmatprep.subr.mxu0 0.0
      %1278 = vmatpush1.msra.mxu0 0.0
      %1279 = vmatprep.subr.mxu0 0.0
      %1280 = vmatpush1.msra.mxu0 0.0
      %1281 = vmatprep.subr.mxu0 0.0
      %1282 = vmatpush1.msra.mxu0 0.0
      %1283 = vmatprep.subr.mxu0 0.0
      %1284 = vmatpush1.msra.mxu0 0.0
      %1285 = vmatprep.subr.mxu0 0.0
      %1286 = vmatpush1.msra.mxu0 0.0
      %1287 = vmatprep.subr.mxu0 0.0
      %1288 = vmatpush1.msra.mxu0 0.0
      %1289 = vmatprep.subr.mxu0 0.0
      %1290 = vmatpush1.msra.mxu0 0.0
      %1291 = vmatprep.subr.mxu0 0.0
      %1292 = vmatpush1.msra.mxu0 0.0
      %1293 = vmatprep.subr.mxu0 0.0
      %1294 = vmatpush1.msra.mxu0 0.0
      %1295 = vmatprep.subr.mxu0 0.0
      %1296 = vmatpush1.msra.mxu0 0.0
      %1297 = vmatprep.subr.mxu0 0.0
      %1298 = vmatpush1.msra.mxu0 0.0
      %1299 = vmatprep.subr.mxu0 0.0
      %1300 = vmatpush1.msra.mxu0 0.0
      %1301 = vmatprep.subr.mxu0 0.0
      %1302 = vmatpush1.msra.mxu0 0.0
      %1303 = vmatprep.subr.mxu0 0.0
      %1304 = vmatpush1.msra.mxu0 0.0
      %1305 = vmatprep.subr.mxu0 0.0
      %1306 = vmatpush1.msra.mxu0 0.0
      %1307 = vmatprep.subr.mxu0 0.0
      %1308 = vmatpush1.msra.mxu0 0.0
      %1309 = vmatprep.subr.mxu0 0.0
      %1310 = vmatpush1.msra.mxu0 0.0
      %1311 = vmatprep.subr.mxu0 0.0
      %1312 = vmatpush1.msra.mxu0 0.0
      %1313 = vmatprep.subr.mxu0 0.0
      %1314 = vmatpush1.msra.mxu0 0.0
      %1315 = vmatprep.subr.mxu0 0.0
      %1316 = vmatpush1.msra.mxu0 0.0
      %1317 = vmatprep.subr.mxu0 0.0
      %1318 = vmatpush1.msra.mxu0 0.0
      %1319 = vmatprep.subr.mxu0 0.0
      %1320 = vmatpush1.msra.mxu0 0.0
      %1321 = vmatprep.subr.mxu0 0.0
      %1322 = vmatpush1.msra.mxu0 0.0
      %1323 = vmatprep.subr.mxu0 0.0
      %1324 = vmatpush1.msra.mxu0 0.0
      %1325 = vmatprep.subr.mxu0 0.0
      %1326 = vmatpush1.msra.mxu0 0.0
      %1327 = vmatprep.subr.mxu0 0.0
      %1328 = vmatpush1.msra.mxu0 0.0
      %1329 = vmatprep.subr.mxu0 0.0
      %1330 = vmatpush1.msra.mxu0 0.0
      %1331 = vmatprep.subr.mxu0 0.0
      %1332 = vmatpush1.msra.mxu0 0.0
      %1333 = vmatprep.subr.mxu0 0.0
      %1334 = vmatpush1.msra.mxu0 0.0
      %1335 = vmatprep.mubr.f32.mxu0 0.0
      %1336 = vmatmul.mubr.f32.gmra.mrb[0].mxu0 %v1269
      %v1337 = vpop.f32.mrb[0].mxu0
      %v1338 = vadd.f32 0.0, %v1337
      %v1339 = vpop.f32.mrb[0].mxu0
      %1340 = vdwg.mxu0
      %v1342 = vsel %vm1150, %v1193, 0
      %1344 = vmatprep.subr.mxu0 0.0
      %1345 = vmatpush1.msra.mxu0 %v844
      %1346 = vmatprep.subr.mxu0 0.0
      %1347 = vmatpush1.msra.mxu0 0.0
      %1348 = vmatprep.subr.mxu0 0.0
      %1349 = vmatpush1.msra.mxu0 0.0
      %1350 = vmatprep.subr.mxu0 0.0
      %1351 = vmatpush1.msra.mxu0 0.0
      %1352 = vmatprep.subr.mxu0 0.0
      %1353 = vmatpush1.msra.mxu0 0.0
      %1354 = vmatprep.subr.mxu0 0.0
      %1355 = vmatpush1.msra.mxu0 0.0
      %1356 = vmatprep.subr.mxu0 0.0
      %1357 = vmatpush1.msra.mxu0 0.0
      %1358 = vmatprep.subr.mxu0 0.0
      %1359 = vmatpush1.msra.mxu0 0.0
      %1360 = vmatprep.subr.mxu0 0.0
      %1361 = vmatpush1.msra.mxu0 0.0
      %1362 = vmatprep.subr.mxu0 0.0
      %1363 = vmatpush1.msra.mxu0 0.0
      %1364 = vmatprep.subr.mxu0 0.0
      %1365 = vmatpush1.msra.mxu0 0.0
      %1366 = vmatprep.subr.mxu0 0.0
      %1367 = vmatpush1.msra.mxu0 0.0
      %1368 = vmatprep.subr.mxu0 0.0
      %1369 = vmatpush1.msra.mxu0 0.0
      %1370 = vmatprep.subr.mxu0 0.0
      %1371 = vmatpush1.msra.mxu0 0.0
      %1372 = vmatprep.subr.mxu0 0.0
      %1373 = vmatpush1.msra.mxu0 0.0
      %1374 = vmatprep.subr.mxu0 0.0
      %1375 = vmatpush1.msra.mxu0 0.0
      %1376 = vmatprep.subr.mxu0 0.0
      %1377 = vmatpush1.msra.mxu0 0.0
      %1378 = vmatprep.subr.mxu0 0.0
      %1379 = vmatpush1.msra.mxu0 0.0
      %1380 = vmatprep.subr.mxu0 0.0
      %1381 = vmatpush1.msra.mxu0 0.0
      %1382 = vmatprep.subr.mxu0 0.0
      %1383 = vmatpush1.msra.mxu0 0.0
      %1384 = vmatprep.subr.mxu0 0.0
      %1385 = vmatpush1.msra.mxu0 0.0
      %1386 = vmatprep.subr.mxu0 0.0
      %1387 = vmatpush1.msra.mxu0 0.0
      %1388 = vmatprep.subr.mxu0 0.0
      %1389 = vmatpush1.msra.mxu0 0.0
      %1390 = vmatprep.subr.mxu0 0.0
      %1391 = vmatpush1.msra.mxu0 0.0
      %1392 = vmatprep.subr.mxu0 0.0
      %1393 = vmatpush1.msra.mxu0 0.0
      %1394 = vmatprep.subr.mxu0 0.0
      %1395 = vmatpush1.msra.mxu0 0.0
      %1396 = vmatprep.subr.mxu0 0.0
      %1397 = vmatpush1.msra.mxu0 0.0
      %1398 = vmatprep.subr.mxu0 0.0
      %1399 = vmatpush1.msra.mxu0 0.0
      %1400 = vmatprep.subr.mxu0 0.0
      %1401 = vmatpush1.msra.mxu0 0.0
      %1402 = vmatprep.subr.mxu0 0.0
      %1403 = vmatpush1.msra.mxu0 0.0
      %1404 = vmatprep.subr.mxu0 0.0
      %1405 = vmatpush1.msra.mxu0 0.0
      %1406 = vmatprep.subr.mxu0 0.0
      %1407 = vmatpush1.msra.mxu0 0.0
      %1408 = vmatprep.mubr.f32.mxu0 0.0
      %1409 = vmatmul.mubr.f32.gmra.mrb[0].mxu0 %v1342
      %v1410 = vpop.f32.mrb[0].mxu0
      %v1411 = vadd.f32 0.0, %v1410
      %v1412 = vpop.f32.mrb[0].mxu0
      %1413 = vdwg.mxu0
      %v1415 = vsel %vm1150, %v1194, 0
      %1417 = vmatprep.subr.mxu0 0.0
      %1418 = vmatpush1.msra.mxu0 %v845
      %1419 = vmatprep.subr.mxu0 0.0
      %1420 = vmatpush1.msra.mxu0 0.0
      %1421 = vmatprep.subr.mxu0 0.0
      %1422 = vmatpush1.msra.mxu0 0.0
      %1423 = vmatprep.subr.mxu0 0.0
      %1424 = vmatpush1.msra.mxu0 0.0
      %1425 = vmatprep.subr.mxu0 0.0
      %1426 = vmatpush1.msra.mxu0 0.0
      %1427 = vmatprep.subr.mxu0 0.0
      %1428 = vmatpush1.msra.mxu0 0.0
      %1429 = vmatprep.subr.mxu0 0.0
      %1430 = vmatpush1.msra.mxu0 0.0
      %1431 = vmatprep.subr.mxu0 0.0
      %1432 = vmatpush1.msra.mxu0 0.0
      %1433 = vmatprep.subr.mxu0 0.0
      %1434 = vmatpush1.msra.mxu0 0.0
      %1435 = vmatprep.subr.mxu0 0.0
      %1436 = vmatpush1.msra.mxu0 0.0
      %1437 = vmatprep.subr.mxu0 0.0
      %1438 = vmatpush1.msra.mxu0 0.0
      %1439 = vmatprep.subr.mxu0 0.0
      %1440 = vmatpush1.msra.mxu0 0.0
      %1441 = vmatprep.subr.mxu0 0.0
      %1442 = vmatpush1.msra.mxu0 0.0
      %1443 = vmatprep.subr.mxu0 0.0
      %1444 = vmatpush1.msra.mxu0 0.0
      %1445 = vmatprep.subr.mxu0 0.0
      %1446 = vmatpush1.msra.mxu0 0.0
      %1447 = vmatprep.subr.mxu0 0.0
      %1448 = vmatpush1.msra.mxu0 0.0
      %1449 = vmatprep.subr.mxu0 0.0
      %1450 = vmatpush1.msra.mxu0 0.0
      %1451 = vmatprep.subr.mxu0 0.0
      %1452 = vmatpush1.msra.mxu0 0.0
      %1453 = vmatprep.subr.mxu0 0.0
      %1454 = vmatpush1.msra.mxu0 0.0
      %1455 = vmatprep.subr.mxu0 0.0
      %1456 = vmatpush1.msra.mxu0 0.0
      %1457 = vmatprep.subr.mxu0 0.0
      %1458 = vmatpush1.msra.mxu0 0.0
      %1459 = vmatprep.subr.mxu0 0.0
      %1460 = vmatpush1.msra.mxu0 0.0
      %1461 = vmatprep.subr.mxu0 0.0
      %1462 = vmatpush1.msra.mxu0 0.0
      %1463 = vmatprep.subr.mxu0 0.0
      %1464 = vmatpush1.msra.mxu0 0.0
      %1465 = vmatprep.subr.mxu0 0.0
      %1466 = vmatpush1.msra.mxu0 0.0
      %1467 = vmatprep.subr.mxu0 0.0
      %1468 = vmatpush1.msra.mxu0 0.0
      %1469 = vmatprep.subr.mxu0 0.0
      %1470 = vmatpush1.msra.mxu0 0.0
      %1471 = vmatprep.subr.mxu0 0.0
      %1472 = vmatpush1.msra.mxu0 0.0
      %1473 = vmatprep.subr.mxu0 0.0
      %1474 = vmatpush1.msra.mxu0 0.0
      %1475 = vmatprep.subr.mxu0 0.0
      %1476 = vmatpush1.msra.mxu0 0.0
      %1477 = vmatprep.subr.mxu0 0.0
      %1478 = vmatpush1.msra.mxu0 0.0
      %1479 = vmatprep.subr.mxu0 0.0
      %1480 = vmatpush1.msra.mxu0 0.0
      %1481 = vmatprep.mubr.f32.mxu0 0.0
      %1482 = vmatmul.mubr.f32.gmra.mrb[0].mxu0 %v1415
      %v1483 = vpop.f32.mrb[0].mxu0
      %v1484 = vadd.f32 0.0, %v1483
      %v1485 = vpop.f32.mrb[0].mxu0
      %1486 = vdwg.mxu0
      %1487 = vst.msk [vmem:[#allocation4] sm:$0xff] %vm778, %v1265
      %1489 = vrot.lane.b32.xlu0 %v1338, 16
      %v1490 = vpop.permute.xlu0 %1489
      %vm1492 = vcmask 261248
      %1493 = vst.msk [vmem:[#allocation4] sm:$0xff] %vm1492, %v1490
      %1495 = vrot.lane.b32.xlu0 %v1411, 32
      %v1496 = vpop.permute.xlu0 %1495
      %vm1498 = vcmask 392448
      %1499 = vst.msk [vmem:[#allocation4] sm:$0xff] %vm1498, %v1496
      %1501 = vrot.lane.b32.xlu0 %v1484, 48
      %v1502 = vpop.permute.xlu0 %1501
      %vm1504 = vcmask 523648
      %1505 = vst.msk [vmem:[#allocation4] sm:$0xff] %vm1504, %v1502
      %v1506 = vld [vmem:[#allocation4] sm:$0xff]
      %v1507 = vld [vmem:[%s615] sm:$0xff]
      %v1508 = vld [vmem:[%s615 + $0x8] sm:$0xff]
      %v1509 = vld [vmem:[%s615 + $0x10] sm:$0xff]
      %v1510 = vld [vmem:[%s615 + $0x18] sm:$0xff]
      %v1511 = vld [vmem:[%s615 + $0x20] sm:$0xff]
      %v1512 = vld [vmem:[%s615 + $0x28] sm:$0xff]
      %v1513 = vld [vmem:[%s615 + $0x30] sm:$0xff]
      %v1514 = vld [vmem:[%s615 + $0x38] sm:$0xff]
      %v1515 = vld [vmem:[%s618] sm:$0x1]
      %v1517 = vlaneseq
      %v1518 = vshrl.u32 %v1517, 7
      %v1519 = vsub.s32 0, %v1518
      %v1520 = vrot.slane %v1515, %v1519
      %vm1522 = vcmask 523264
      %v1524 = vsel %vm1522, %v1506, 0
      %1526 = vmatprep.subr.mxu0 0.0
      %1527 = vmatpush1.msra.mxu0 %v1507
      %1528 = vmatprep.subr.mxu0 0.0
      %1529 = vmatpush1.msra.mxu0 %v1508
      %1530 = vmatprep.subr.mxu0 0.0
      %1531 = vmatpush1.msra.mxu0 %v1509
      %1532 = vmatprep.subr.mxu0 0.0
      %1533 = vmatpush1.msra.mxu0 %v1510
      %1534 = vmatprep.subr.mxu0 0.0
      %1535 = vmatpush1.msra.mxu0 %v1511
      %1536 = vmatprep.subr.mxu0 0.0
      %1537 = vmatpush1.msra.mxu0 %v1512
      %1538 = vmatprep.subr.mxu0 0.0
      %1539 = vmatpush1.msra.mxu0 %v1513
      %1540 = vmatprep.subr.mxu0 0.0
      %1541 = vmatpush1.msra.mxu0 %v1514
      %1542 = vmatprep.subr.mxu0 0.0
      %1543 = vmatpush1.msra.mxu0 0.0
      %1544 = vmatprep.subr.mxu0 0.0
      %1545 = vmatpush1.msra.mxu0 0.0
      %1546 = vmatprep.subr.mxu0 0.0
      %1547 = vmatpush1.msra.mxu0 0.0
      %1548 = vmatprep.subr.mxu0 0.0
      %1549 = vmatpush1.msra.mxu0 0.0
      %1550 = vmatprep.subr.mxu0 0.0
      %1551 = vmatpush1.msra.mxu0 0.0
      %1552 = vmatprep.subr.mxu0 0.0
      %1553 = vmatpush1.msra.mxu0 0.0
      %1554 = vmatprep.subr.mxu0 0.0
      %1555 = vmatpush1.msra.mxu0 0.0
      %1556 = vmatprep.subr.mxu0 0.0
      %1557 = vmatpush1.msra.mxu0 0.0
      %1558 = vmatprep.subr.mxu0 0.0
      %1559 = vmatpush1.msra.mxu0 0.0
      %1560 = vmatprep.subr.mxu0 0.0
      %1561 = vmatpush1.msra.mxu0 0.0
      %1562 = vmatprep.subr.mxu0 0.0
      %1563 = vmatpush1.msra.mxu0 0.0
      %1564 = vmatprep.subr.mxu0 0.0
      %1565 = vmatpush1.msra.mxu0 0.0
      %1566 = vmatprep.subr.mxu0 0.0
      %1567 = vmatpush1.msra.mxu0 0.0
      %1568 = vmatprep.subr.mxu0 0.0
      %1569 = vmatpush1.msra.mxu0 0.0
      %1570 = vmatprep.subr.mxu0 0.0
      %1571 = vmatpush1.msra.mxu0 0.0
      %1572 = vmatprep.subr.mxu0 0.0
      %1573 = vmatpush1.msra.mxu0 0.0
      %1574 = vmatprep.subr.mxu0 0.0
      %1575 = vmatpush1.msra.mxu0 0.0
      %1576 = vmatprep.subr.mxu0 0.0
      %1577 = vmatpush1.msra.mxu0 0.0
      %1578 = vmatprep.subr.mxu0 0.0
      %1579 = vmatpush1.msra.mxu0 0.0
      %1580 = vmatprep.subr.mxu0 0.0
      %1581 = vmatpush1.msra.mxu0 0.0
      %1582 = vmatprep.subr.mxu0 0.0
      %1583 = vmatpush1.msra.mxu0 0.0
      %1584 = vmatprep.subr.mxu0 0.0
      %1585 = vmatpush1.msra.mxu0 0.0
      %1586 = vmatprep.subr.mxu0 0.0
      %1587 = vmatpush1.msra.mxu0 0.0
      %1588 = vmatprep.subr.mxu0 0.0
      %1589 = vmatpush1.msra.mxu0 0.0
      %1590 = vmatprep.mubr.f32.mxu0 0.0
      %1591 = vmatmul.mubr.f32.gmra.mrb[0].mxu0 %v1524
      %v1592 = vpop.f32.mrb[0].mxu0
      %v1593 = vadd.f32 %v1520, %v1592
      %v1594 = vpop.f32.mrb[0].mxu0
      %1595 = vdwg.mxu0
      %v1596 = vadd.f32 %v1593, %v664
      %1597 = vst.msk [vmem:[%s648] sm:$0xff] %vm667, %v1596
      %v1598 = vld [vmem:[%s621] sm:$0x1]
      %v1599 = vld [vmem:[%s624] sm:$0x1]
      %v1600 = vsel %vm667, %v1596, 0.0
      %1601 = vadd.xlane.f32.xlu0 %v1600
      %v1602 = vpop.xlane.xlu0 %1601
      %v1603 = vmul.f32 %v1602, %v671
      %v1604 = vsub.f32 %v1596, %v1603
      %v1605 = vmul.f32 %v1604, %v1604
      %v1606 = vsel %vm667, %v1605, 0.0
      %1607 = vadd.xlane.f32.xlu0 %v1606
      %v1608 = vpop.xlane.xlu0 %1607
      %v1609 = vmul.f32 %v1608, %v671
      %v1610 = vadd.f32 %v1609, 1e-05
      %v1611 = vrsqrt.pop %v1610
      %v1612 = vmul.f32 %v1604, %v1611
      %v1614 = vlaneseq
      %v1615 = vshrl.u32 %v1614, 7
      %v1616 = vsub.s32 0, %v1615
      %v1617 = vrot.slane %v1598, %v1616
      %v1619 = vmul.f32 %v1612, %v1617
      %v1621 = vlaneseq
      %v1622 = vshrl.u32 %v1621, 7
      %v1623 = vsub.s32 0, %v1622
      %v1624 = vrot.slane %v1599, %v1623
      %v1626 = vadd.f32 %v1619, %v1624
      %v1627 = vld [vmem:[%s629] sm:$0xff]
      %v1628 = vld [vmem:[%s629 + $0x8] sm:$0xff]
      %v1629 = vld [vmem:[%s629 + $0x10] sm:$0xff]
      %v1630 = vld [vmem:[%s629 + $0x18] sm:$0xff]
      %v1631 = vld [vmem:[%s632] sm:$0x1]
      %v1633 = vlaneseq
      %v1634 = vshrl.u32 %v1633, 7
      %v1635 = vsub.s32 0, %v1634
      %v1636 = vrot.slane %v1631, %v1635
      %v1639 = vsel %vm667, %v1626, 0
      %1641 = vmatprep.subr.mxu0 0.0
      %1642 = vmatpush1.msra.mxu0 %v1627
      %1643 = vmatprep.subr.mxu0 0.0
      %1644 = vmatpush1.msra.mxu0 %v1628
      %1645 = vmatprep.subr.mxu0 0.0
      %1646 = vmatpush1.msra.mxu0 %v1629
      %1647 = vmatprep.subr.mxu0 0.0
      %1648 = vmatpush1.msra.mxu0 %v1630
      %1649 = vmatprep.subr.mxu0 0.0
      %1650 = vmatpush1.msra.mxu0 0.0
      %1651 = vmatprep.subr.mxu0 0.0
      %1652 = vmatpush1.msra.mxu0 0.0
      %1653 = vmatprep.subr.mxu0 0.0
      %1654 = vmatpush1.msra.mxu0 0.0
      %1655 = vmatprep.subr.mxu0 0.0
      %1656 = vmatpush1.msra.mxu0 0.0
      %1657 = vmatprep.subr.mxu0 0.0
      %1658 = vmatpush1.msra.mxu0 0.0
      %1659 = vmatprep.subr.mxu0 0.0
      %1660 = vmatpush1.msra.mxu0 0.0
      %1661 = vmatprep.subr.mxu0 0.0
      %1662 = vmatpush1.msra.mxu0 0.0
      %1663 = vmatprep.subr.mxu0 0.0
      %1664 = vmatpush1.msra.mxu0 0.0
      %1665 = vmatprep.subr.mxu0 0.0
      %1666 = vmatpush1.msra.mxu0 0.0
      %1667 = vmatprep.subr.mxu0 0.0
      %1668 = vmatpush1.msra.mxu0 0.0
      %1669 = vmatprep.subr.mxu0 0.0
      %1670 = vmatpush1.msra.mxu0 0.0
      %1671 = vmatprep.subr.mxu0 0.0
      %1672 = vmatpush1.msra.mxu0 0.0
      %1673 = vmatprep.subr.mxu0 0.0
      %1674 = vmatpush1.msra.mxu0 0.0
      %1675 = vmatprep.subr.mxu0 0.0
      %1676 = vmatpush1.msra.mxu0 0.0
      %1677 = vmatprep.subr.mxu0 0.0
      %1678 = vmatpush1.msra.mxu0 0.0
      %1679 = vmatprep.subr.mxu0 0.0
      %1680 = vmatpush1.msra.mxu0 0.0
      %1681 = vmatprep.subr.mxu0 0.0
      %1682 = vmatpush1.msra.mxu0 0.0
      %1683 = vmatprep.subr.mxu0 0.0
      %1684 = vmatpush1.msra.mxu0 0.0
      %1685 = vmatprep.subr.mxu0 0.0
      %1686 = vmatpush1.msra.mxu0 0.0
      %1687 = vmatprep.subr.mxu0 0.0
      %1688 = vmatpush1.msra.mxu0 0.0
      %1689 = vmatprep.subr.mxu0 0.0
      %1690 = vmatpush1.msra.mxu0 0.0
      %1691 = vmatprep.subr.mxu0 0.0
      %1692 = vmatpush1.msra.mxu0 0.0
      %1693 = vmatprep.subr.mxu0 0.0
      %1694 = vmatpush1.msra.mxu0 0.0
      %1695 = vmatprep.subr.mxu0 0.0
      %1696 = vmatpush1.msra.mxu0 0.0
      %1697 = vmatprep.subr.mxu0 0.0
      %1698 = vmatpush1.msra.mxu0 0.0
      %1699 = vmatprep.subr.mxu0 0.0
      %1700 = vmatpush1.msra.mxu0 0.0
      %1701 = vmatprep.subr.mxu0 0.0
      %1702 = vmatpush1.msra.mxu0 0.0
      %1703 = vmatprep.subr.mxu0 0.0
      %1704 = vmatpush1.msra.mxu0 0.0
      %1705 = vmatprep.mubr.f32.mxu0 0.0
      %1706 = vmatmul.mubr.f32.gmra.mrb[0].mxu0 %v1639
      %v1707 = vpop.f32.mrb[0].mxu0
      %v1708 = vadd.f32 %v1636, %v1707
      %v1709 = vpop.f32.mrb[0].mxu0
      %1710 = vdwg.mxu0
      %v1711 = vmul.f32 %v1708, %v1708
      %v1712 = vmul.f32 %v1708, %v1711
      %v1713 = vmul.f32 %v1712, 0.044715
      %v1714 = vadd.f32 %v1708, %v1713
      %v1715 = vmul.f32 %v1714, 0.7978846
      %v1716 = vtanh.pop %v1715
      %v1717 = vadd.f32 %v1716, 1.0
      %v1718 = vmul.f32 %v1717, 0.5
      %v1719 = vmul.f32 %v1708, %v1718
      %v1720 = vld [vmem:[%s637] sm:$0xff]
      %v1721 = vld [vmem:[%s637 + $0x8] sm:$0xff]
      %v1722 = vld [vmem:[%s637 + $0x10] sm:$0xff]
      %v1723 = vld [vmem:[%s637 + $0x18] sm:$0xff]
      %v1724 = vld [vmem:[%s637 + $0x20] sm:$0xff]
      %v1725 = vld [vmem:[%s637 + $0x28] sm:$0xff]
      %v1726 = vld [vmem:[%s637 + $0x30] sm:$0xff]
      %v1727 = vld [vmem:[%s637 + $0x38] sm:$0xff]
      %v1728 = vld [vmem:[%s640] sm:$0x1]
      %v1730 = vlaneseq
      %v1731 = vshrl.u32 %v1730, 7
      %v1732 = vsub.s32 0, %v1731
      %v1733 = vrot.slane %v1728, %v1732
      %v1736 = vsel %vm1522, %v1719, 0
      %1738 = vmatprep.subr.mxu0 0.0
      %1739 = vmatpush1.msra.mxu0 %v1720
      %1740 = vmatprep.subr.mxu0 0.0
      %1741 = vmatpush1.msra.mxu0 %v1721
      %1742 = vmatprep.subr.mxu0 0.0
      %1743 = vmatpush1.msra.mxu0 %v1722
      %1744 = vmatprep.subr.mxu0 0.0
      %1745 = vmatpush1.msra.mxu0 %v1723
      %1746 = vmatprep.subr.mxu0 0.0
      %1747 = vmatpush1.msra.mxu0 %v1724
      %1748 = vmatprep.subr.mxu0 0.0
      %1749 = vmatpush1.msra.mxu0 %v1725
      %1750 = vmatprep.subr.mxu0 0.0
      %1751 = vmatpush1.msra.mxu0 %v1726
      %1752 = vmatprep.subr.mxu0 0.0
      %1753 = vmatpush1.msra.mxu0 %v1727
      %1754 = vmatprep.subr.mxu0 0.0
      %1755 = vmatpush1.msra.mxu0 0.0
      %1756 = vmatprep.subr.mxu0 0.0
      %1757 = vmatpush1.msra.mxu0 0.0
      %1758 = vmatprep.subr.mxu0 0.0
      %1759 = vmatpush1.msra.mxu0 0.0
      %1760 = vmatprep.subr.mxu0 0.0
      %1761 = vmatpush1.msra.mxu0 0.0
      %1762 = vmatprep.subr.mxu0 0.0
      %1763 = vmatpush1.msra.mxu0 0.0
      %1764 = vmatprep.subr.mxu0 0.0
      %1765 = vmatpush1.msra.mxu0 0.0
      %1766 = vmatprep.subr.mxu0 0.0
      %1767 = vmatpush1.msra.mxu0 0.0
      %1768 = vmatprep.subr.mxu0 0.0
      %1769 = vmatpush1.msra.mxu0 0.0
      %1770 = vmatprep.subr.mxu0 0.0
      %1771 = vmatpush1.msra.mxu0 0.0
      %1772 = vmatprep.subr.mxu0 0.0
      %1773 = vmatpush1.msra.mxu0 0.0
      %1774 = vmatprep.subr.mxu0 0.0
      %1775 = vmatpush1.msra.mxu0 0.0
      %1776 = vmatprep.subr.mxu0 0.0
      %1777 = vmatpush1.msra.mxu0 0.0
      %1778 = vmatprep.subr.mxu0 0.0
      %1779 = vmatpush1.msra.mxu0 0.0
      %1780 = vmatprep.subr.mxu0 0.0
      %1781 = vmatpush1.msra.mxu0 0.0
      %1782 = vmatprep.subr.mxu0 0.0
      %1783 = vmatpush1.msra.mxu0 0.0
      %1784 = vmatprep.subr.mxu0 0.0
      %1785 = vmatpush1.msra.mxu0 0.0
      %1786 = vmatprep.subr.mxu0 0.0
      %1787 = vmatpush1.msra.mxu0 0.0
      %1788 = vmatprep.subr.mxu0 0.0
      %1789 = vmatpush1.msra.mxu0 0.0
      %1790 = vmatprep.subr.mxu0 0.0
      %1791 = vmatpush1.msra.mxu0 0.0
      %1792 = vmatprep.subr.mxu0 0.0
      %1793 = vmatpush1.msra.mxu0 0.0
      %1794 = vmatprep.subr.mxu0 0.0
      %1795 = vmatpush1.msra.mxu0 0.0
      %1796 = vmatprep.subr.mxu0 0.0
      %1797 = vmatpush1.msra.mxu0 0.0
      %1798 = vmatprep.subr.mxu0 0.0
      %1799 = vmatpush1.msra.mxu0 0.0
      %1800 = vmatprep.subr.mxu0 0.0
      %1801 = vmatpush1.msra.mxu0 0.0
      %1802 = vmatprep.mubr.f32.mxu0 0.0
      %1803 = vmatmul.mubr.f32.gmra.mrb[0].mxu0 %v1736
      %v1804 = vpop.f32.mrb[0].mxu0
      %v1805 = vadd.f32 %v1733, %v1804
      %v1806 = vpop.f32.mrb[0].mxu0
      %1807 = vdwg.mxu0
      %v1808 = vadd.f32 %v1805, %v1596
      %1809 = vst.msk [vmem:[%s656] sm:$0xff] %vm667, %v1808
      %1810 = vst.msk [vmem:[#allocation2] sm:$0xff] %vm667, %v1808
      %p1811 = scmp.lt.s32.totalorder %s30, 1
      %s1812 = scalar_select %p1811, %s30, 1
      %p1813 = scmp.lt.s32.totalorder %s29, 1
      %s1814 = scalar_select %p1813, %s29, 1
      %s1815 = smul.addr %s1812, 2
      %s1816 = sadd.s32 %s1814, %s1815
      %s1817 = smul.addr %s1816, 8
      %s1818 = scalar_lea.vmem %s12, %s1817
      %p1819 = scmp.lt.s32.totalorder %s30, 1
      %s1820 = scalar_select %p1819, %s30, 1
      %p1821 = scmp.lt.s32.totalorder %s29, 1
      %s1822 = scalar_select %p1821, %s29, 1
      %s1823 = smul.addr %s1820, 2
      %s1824 = sadd.s32 %s1822, %s1823
      %s1825 = smul.addr %s1824, 8
      %s1826 = scalar_lea.vmem %s13, %s1825
      // Predicated region
      $region73: #{transformer_forward_pallas.1} parent=67 // pred_check
        %p1827 = pneg %p369
      $region74: #{transformer_forward_pallas.1} parent=67 // pred_check_branch
        %1829 = sbr.rel (%p1827) target = $region76
      $region75: #{transformer_forward_pallas.1} parent=67 // pred_region
        _
      $region76: #{transformer_forward_pallas.1} parent=67 // pred_fallthru
        _
      // Predicated region
      $region77: #{transformer_forward_pallas.1} parent=67 // pred_check
        %p1830 = pneg %p397
      $region78: #{transformer_forward_pallas.1} parent=67 // pred_check_branch
        %1832 = sbr.rel (%p1830) target = $region80
      $region79: #{transformer_forward_pallas.1} parent=67 // pred_region
        _
      $region80: #{transformer_forward_pallas.1} parent=67 // pred_fallthru
        _
    $region68: #{transformer_forward_pallas.1} parent=5 // pred_fallthru
      _
    %p1833 = scmp.le.s32.totalorder 2, %s20
    // Predicated region
    $region81: #{transformer_forward_pallas.1} parent=5 // pred_check
      %p1834 = pneg %p1833
    $region82: #{transformer_forward_pallas.1} parent=5 // pred_check_branch
      %1836 = sbr.rel (%p1834) target = $region84
    $region83: #{transformer_forward_pallas.1} parent=5 // pred_region
      %s1837 = ssub.s32 %s20, 2
      // Predicated region
      $region85: #{transformer_forward_pallas.1} parent=83 // pred_check
        %p1838 = pneg %p375
      $region86: #{transformer_forward_pallas.1} parent=83 // pred_check_branch
        %1840 = sbr.rel (%p1838) target = $region88
      $region87: #{transformer_forward_pallas.1} parent=83 // pred_region
        %p1841 = scmp.lt.s32.totalorder %s32, 1
        %s1842 = scalar_select %p1841, %s32, 1
        %p1843 = scmp.lt.s32.totalorder %s31, 1
        %s1844 = scalar_select %p1843, %s31, 1
        %s1845 = smul.addr %s1842, 2
        %s1846 = sadd.s32 %s1844, %s1845
        %s1847 = smul.addr %s1846, 8
        %s1848 = scalar_lea.vmem %s12, %s1847
      $region88: #{transformer_forward_pallas.1} parent=83 // pred_fallthru
        _
      // Predicated region
      $region89: #{transformer_forward_pallas.1} parent=83 // pred_check
        %p1849 = pneg %p403
      $region90: #{transformer_forward_pallas.1} parent=83 // pred_check_branch
        %1851 = sbr.rel (%p1849) target = $region92
      $region91: #{transformer_forward_pallas.1} parent=83 // pred_region
        %p1852 = scmp.lt.s32.totalorder %s32, 1
        %s1853 = scalar_select %p1852, %s32, 1
        %p1854 = scmp.lt.s32.totalorder %s31, 1
        %s1855 = scalar_select %p1854, %s31, 1
        %s1856 = smul.addr %s1853, 2
        %s1857 = sadd.s32 %s1855, %s1856
        %s1858 = smul.addr %s1857, 8
        %s1859 = scalar_lea.vmem %s13, %s1858
      $region92: #{transformer_forward_pallas.1} parent=83 // pred_fallthru
        _
    $region84: #{transformer_forward_pallas.1} parent=5 // pred_fallthru
      _
  $region6: #{transformer_forward_pallas.1} parent=0 // loop_footer
    %s24 = sadd.s32 1, %s20
  $region7: #{transformer_forward_pallas.1} parent=0 // loop_footer_branch
    %19 = sbr.rel target = $region3
  $region8: #{transformer_forward_pallas.1} parent=0 // loop_exit
    _

</llo_original>
